<compile_context>
chip_gen: v5e
topology: v5e:2x2
jax: 0.10.0
libtpu: 0.0.40
codegen_flags: <defaults>
</compile_context>

<pallas_src>
import functools

import jax
import jax.numpy as jnp
from jax import lax
from jax.experimental import pallas as pl
from jax.experimental.pallas import tpu as pltpu

_PAD = 8  # fringe rows above/below each accumulator plane (>=1 is required for
          # the +-1 shifted epilogue reads; 8 keeps hot-loop stores aligned).


def conv3x3_bn_kernel(x_ref, w_ref, scale_ref, shift_ref, o_ref, acc_ref,
                      *, row_w, w_padded):
    """One (image-block, Cout-tile) output tile; accumulates over Cin tiles.

    x_ref    : (NB, M, TK)            flattened NHWC rows, M = H * Wp
    w_ref    : (3, 3, TK, TN)         HWIO weight tile (conv weights only)
    scale_ref: (1, TN) f32            gamma / sqrt(var + eps)
    shift_ref: (1, TN) f32            beta - mean * scale
    o_ref    : (NB, M, TN)            flattened output tile
    acc_ref  : (NB, 3, 2*PAD + M, TN) f32 accumulator: one plane per horizontal
                                      tap (dw), padded so the epilogue reads
                                      +-1-row shifts as sublane-offset slices.
    """
    NB, M, TK = x_ref.shape
    TN = o_ref.shape[-1]
    Wp = row_w
    PAD = _PAD
    k = pl.program_id(2)

    @pl.when(k == 0)
    def _init():
        # TODO(synk): the body rows could be written with '=' on the first k
        # step (saves ~3*M*TN f32 stores per tile) at the cost of a duplicated
        # traced code path; kept simple for robustness.
        acc_ref[...] = jnp.zeros_like(acc_ref)

    # Hot loop: NB images reuse the resident weight tile.
    for img in range(NB):
        xf = x_ref[img]                    # (M, TK)
        x_top = xf[: M - Wp]               # dh = 0 taps -> dest rows [Wp, M)
        x_bot = xf[Wp:]                    # dh = 2 taps -> dest rows [0, M-Wp)
        for dw in range(3):
            p1 = jnp.dot(xf, w_ref[1, dw], preferred_element_type=jnp.float32)
            p0 = jnp.dot(x_top, w_ref[0, dw],
                         preferred_element_type=jnp.float32)
            p2 = jnp.dot(x_bot, w_ref[2, dw],
                         preferred_element_type=jnp.float32)
            # Combine the three vertical taps in registers, then issue one
            # accumulate per DISJOINT destination segment: M rows of
            # accumulator read-modify-write per dw instead of ~3M.
            top = p1[:Wp] + p2[:Wp]                       # dest rows [0, Wp)
            bot = p1[M - Wp:] + p0[M - 2 * Wp:]           # dest rows [M-Wp, M)
            acc_ref[img, dw, PAD: PAD + Wp, :] += top
            if M > 2 * Wp:
                mid = p1[Wp: M - Wp] + p0[: M - 2 * Wp] + p2[Wp:]
                acc_ref[img, dw, PAD + Wp: PAD + M - Wp, :] += mid
            acc_ref[img, dw, PAD + M - Wp: PAD + M, :] += bot

    # Epilogue (once per output tile): combine the horizontal taps with +-1
    # sublane-shifted reads, apply BN scale/shift in f32, store lane-dense.
    @pl.when(k == pl.num_programs(2) - 1)
    def _finalize():
        scale = scale_ref[...]             # (1, TN)
        shift = shift_ref[...]             # (1, TN)
        if not w_padded:
            # W == Wp: the flattened +-1 reads wrap across row boundaries and
            # must be masked.  Narrow (M, 1) column index, broadcast in where.
            col = lax.broadcasted_iota(
                jnp.int32, (M // Wp, Wp, 1), 1).reshape(M, 1)
            not_first_col = col > 0
            not_last_col = col < Wp - 1
        for img in range(NB):
            a1 = acc_ref[img, 1, PAD: PAD + M, :]
            a0 = acc_ref[img, 0, PAD - 1: PAD - 1 + M, :]   # left-neighbour tap
            a2 = acc_ref[img, 2, PAD + 1: PAD + 1 + M, :]   # right-neighbour
            if w_padded:
                # Wrapped reads land on zero-padded input columns -> already 0.
                y = a1 + a0 + a2
            else:
                y = (a1 + jnp.where(not_first_col, a0, 0.0)
                     + jnp.where(not_last_col, a2, 0.0))
            o_ref[img] = (y * scale + shift).astype(o_ref.dtype)


def _prefer_wide_tiles():
    # 256-wide channel tiles match the v6e/v7x 2x256x256 MXU; v5-class parts
    # (4x128x128) keep 128.  Unknown parts default to wide (still correct).
    try:
        kind = jax.devices()[0].device_kind.lower()
    except Exception:
        return True
    return not any(tag in kind for tag in ("v2", "v3", "v4", "v5"))


def _pick_tile(c, pref):
    for t in (pref, 128):
        if c >= t and c % t == 0:
            return t
    return c


def _pick_batch_block(n, m, tk, tn, csize, osize, max_nb, budget_bytes):
    for nb in range(min(n, max_nb), 1, -1):
        if n % nb:
            continue
        per = nb * (3 * (m + 2 * _PAD) * tn * 4      # f32 accumulator planes
                    + 2 * m * tk * csize             # double-buffered x block
                    + 2 * m * tn * osize)            # double-buffered out block
        if per <= budget_bytes:
            return nb
    return 1


def conv_bn_forward(x_nchw, weight_oihw, gamma, beta, running_mean,
                    running_var, eps=1e-5, *, compute_dtype=jnp.bfloat16,
                    channel_tile=None, max_images_per_step=4):
    """Forward of Conv: y = BatchNorm2d(Conv2d_3x3(x)), eval-mode BN."""
    N, Cin, H, W = x_nchw.shape
    Cout = weight_oihw.shape[0]
    assert weight_oihw.shape == (Cout, Cin, 3, 3)
    assert H >= 2 and W >= 2

    Wp = ((W + 7) // 8) * 8              # keep flattened rows sublane-aligned
    M = H * Wp

    pref = channel_tile if channel_tile is not None else (
        256 if _prefer_wide_tiles() else 128)
    TK = _pick_tile(Cin, pref)
    TN = _pick_tile(Cout, pref)

    csize = jnp.dtype(compute_dtype).itemsize
    osize = jnp.dtype(x_nchw.dtype).itemsize
    NB = _pick_batch_block(N, M, TK, TN, csize, osize,
                           max_nb=max_images_per_step, budget_bytes=24 << 20)

    # --- wrapper glue: layout, width padding, BN parameter prep -----------
    x = jnp.transpose(x_nchw, (0, 2, 3, 1))                        # NHWC
    if Wp != W:
        x = jnp.pad(x, ((0, 0), (0, 0), (0, Wp - W), (0, 0)))
    x = x.reshape(N, M, Cin).astype(compute_dtype)
    w = jnp.transpose(weight_oihw, (2, 3, 1, 0)).astype(compute_dtype)  # HWIO
    scale = (gamma.astype(jnp.float32)
             / jnp.sqrt(running_var.astype(jnp.float32) + eps))
    shift = beta.astype(jnp.float32) - running_mean.astype(jnp.float32) * scale
    scale = scale.reshape(1, Cout)
    shift = shift.reshape(1, Cout)

    # VMEM limit derived from the actual block sizes (double-buffered operands
    # + f32 accumulator scratch), clamped to the v7x-safe 64 MiB.
    derived = (2 * (NB * M * TK * csize + 9 * TK * TN * csize
                    + NB * M * TN * osize + 2 * TN * 4)
               + NB * 3 * (M + 2 * _PAD) * TN * 4 + (4 << 20))
    vmem_limit = int(min(max(derived, 32 << 20), 64 << 20))

    kernel = functools.partial(conv3x3_bn_kernel, row_w=Wp,
                               w_padded=(Wp != W))
    grid = (N // NB, Cout // TN, Cin // TK)

    out_flat = pl.pallas_call(
        kernel,
        out_shape=jax.ShapeDtypeStruct((N, M, Cout), x_nchw.dtype),
        grid_spec=pltpu.PrefetchScalarGridSpec(
            num_scalar_prefetch=0,
            grid=grid,
            in_specs=[
                pl.BlockSpec((NB, M, TK), lambda n, j, k: (n, 0, k)),
                pl.BlockSpec((3, 3, TK, TN), lambda n, j, k: (0, 0, k, j)),
                pl.BlockSpec((1, TN), lambda n, j, k: (0, j)),
                pl.BlockSpec((1, TN), lambda n, j, k: (0, j)),
            ],
            out_specs=pl.BlockSpec((NB, M, TN), lambda n, j, k: (n, 0, j)),
            scratch_shapes=[
                pltpu.VMEM((NB, 3, M + 2 * _PAD, TN), jnp.float32),
            ],
        ),
        compiler_params=pltpu.CompilerParams(
            dimension_semantics=("parallel", "parallel", "arbitrary"),
            vmem_limit_bytes=vmem_limit,
        ),
    )(x, w, scale, shift)

    out = out_flat.reshape(N, H, Wp, Cout)[:, :, :W, :]
    return jnp.transpose(out, (0, 3, 1, 2))                        # NCHW


def _reference(x_nchw, weight_oihw, gamma, beta, running_mean, running_var,
               eps=1e-5):
    y = lax.conv_general_dilated(
        x_nchw, weight_oihw, window_strides=(1, 1), padding="SAME",
        dimension_numbers=("NCHW", "OIHW", "NCHW"))
    scale = gamma / jnp.sqrt(running_var + eps)
    shift = beta - running_mean * scale
    return y * scale[None, :, None, None] + shift[None, :, None, None]


if __name__ == "__main__":
    key = jax.random.PRNGKey(0)

    # --- check 1: small shapes, f32 compute, W not a multiple of 8 (exercises
    #     the width-padding / no-mask epilogue path), single channel tile ---
    N, Cin, Cout, H, W = 2, 8, 8, 6, 6
    kx, kw, kg, kb, km, kv = jax.random.split(key, 6)
    x = jax.random.normal(kx, (N, Cin, H, W), dtype=jnp.float32)
    weight = jax.random.normal(kw, (Cout, Cin, 3, 3), dtype=jnp.float32) * 0.1
    gamma = 1.0 + 0.1 * jax.random.normal(kg, (Cout,), dtype=jnp.float32)
    beta = 0.1 * jax.random.normal(kb, (Cout,), dtype=jnp.float32)
    rmean = 0.1 * jax.random.normal(km, (Cout,), dtype=jnp.float32)
    rvar = 1.0 + 0.1 * jnp.abs(
        jax.random.normal(kv, (Cout,), dtype=jnp.float32))

    out = jax.block_until_ready(
        conv_bn_forward(x, weight, gamma, beta, rmean, rvar,
                        compute_dtype=jnp.float32))
    ref = _reference(x, weight, gamma, beta, rmean, rvar)
    assert out.shape == (N, Cout, H, W)
    assert jnp.allclose(out, ref, atol=1e-3, rtol=1e-3)

    # --- check 2: TaT-like channels (512 -> 512), bf16 default, W % 8 == 0
    #     (mask epilogue path), batch-blocked + channel-tiled grid with
    #     multi-step Cin accumulation and multiple Cout tiles ---
    N2, Cin2, Cout2, H2, W2 = 2, 512, 512, 8, 8
    k2 = jax.random.split(jax.random.PRNGKey(1), 6)
    x2 = jax.random.normal(k2[0], (N2, Cin2, H2, W2), dtype=jnp.float32)
    w2 = jax.random.normal(k2[1], (Cout2, Cin2, 3, 3), dtype=jnp.float32) * 0.05
    g2 = 1.0 + 0.1 * jax.random.normal(k2[2], (Cout2,), dtype=jnp.float32)
    b2 = 0.1 * jax.random.normal(k2[3], (Cout2,), dtype=jnp.float32)
    m2 = 0.1 * jax.random.normal(k2[4], (Cout2,), dtype=jnp.float32)
    v2 = 1.0 + 0.1 * jnp.abs(
        jax.random.normal(k2[5], (Cout2,), dtype=jnp.float32))

    out2 = jax.block_until_ready(conv_bn_forward(x2, w2, g2, b2, m2, v2))
    ref2 = _reference(x2, w2, g2, b2, m2, v2)
    assert out2.shape == (N2, Cout2, H2, W2)
    err = jnp.max(jnp.abs(out2 - ref2)) / (jnp.max(jnp.abs(ref2)) + 1e-6)
    assert err < 2e-2, float(err)

    print("KERNEL_OK")
</pallas_src>

<mosaic_0001>
module attributes {stable_mosaic.version = 11 : i64} {
  func.func @conv3x3_bn_kernel(%arg0: i32, %arg1: i32, %arg2: i32, %arg3: memref<2x48x8xf32, #tpu.memory_space<vmem>>, %arg4: memref<3x3x8x8xf32, #tpu.memory_space<vmem>>, %arg5: memref<1x8xf32, #tpu.memory_space<vmem>>, %arg6: memref<1x8xf32, #tpu.memory_space<vmem>>, %arg7: memref<2x48x8xf32, #tpu.memory_space<vmem>>, %arg8: memref<2x3x64x8xf32, #tpu.memory_space<vmem>>) attributes {dimension_semantics = [#tpu.dimension_semantics<parallel>, #tpu.dimension_semantics<parallel>, #tpu.dimension_semantics<arbitrary>], iteration_bounds = array<i64: 1, 1, 1>, scalar_prefetch = 0 : i64, scratch_operands = 1 : i64, tpu.core_type = #tpu.core_type<tc>, window_params = [{transform_indices = @transform_0, window_bounds = array<i64: 2, 48, 8>}, {transform_indices = @transform_1, window_bounds = array<i64: 3, 3, 8, 8>}, {transform_indices = @transform_2, window_bounds = array<i64: 1, 8>}, {transform_indices = @transform_3, window_bounds = array<i64: 1, 8>}, {transform_indices = @transform_4, window_bounds = array<i64: 2, 48, 8>}]} {
    %c0_i32 = arith.constant 0 : i32
    %0 = arith.cmpi eq, %arg2, %c0_i32 : i32
    %1 = arith.extui %0 : i1 to i32
    %c0_i32_0 = arith.constant 0 : i32
    %2 = arith.cmpi ne, %1, %c0_i32_0 : i32
    scf.if %2 {
      %cst_236 = arith.constant 0.000000e+00 : f32
      %242 = vector.broadcast %cst_236 : f32 to vector<2x3x64x8xf32>
      %c0_237 = arith.constant 0 : index
      %c0_238 = arith.constant 0 : index
      %c0_239 = arith.constant 0 : index
      %c0_240 = arith.constant 0 : index
      %243 = vector.load %arg8[%c0_237, %c0_238, %c0_239, %c0_240] : memref<2x3x64x8xf32, #tpu.memory_space<vmem>>, vector<2x3x64x8xf32>
      tpu.vector_store %arg8[%c0_237, %c0_238, %c0_239, %c0_240], %242 {strides = array<i32>} : memref<2x3x64x8xf32, #tpu.memory_space<vmem>>, vector<2x3x64x8xf32>,
    } else {
    }
    %c0 = arith.constant 0 : index
    %c0_1 = arith.constant 0 : index
    %c0_2 = arith.constant 0 : index
    %3 = vector.load %arg3[%c0, %c0_1, %c0_2] : memref<2x48x8xf32, #tpu.memory_space<vmem>>, vector<1x48x8xf32>
    %4 = vector.shape_cast %3 : vector<1x48x8xf32> to vector<48x8xf32>
    %5 = vector.extract_strided_slice %4 {offsets = [0, 0], sizes = [40, 8], strides = [1, 1]} : vector<48x8xf32> to vector<40x8xf32>
    %6 = vector.extract_strided_slice %4 {offsets = [8, 0], sizes = [40, 8], strides = [1, 1]} : vector<48x8xf32> to vector<40x8xf32>
    %c1 = arith.constant 1 : index
    %c0_3 = arith.constant 0 : index
    %c0_4 = arith.constant 0 : index
    %c0_5 = arith.constant 0 : index
    %7 = vector.load %arg4[%c1, %c0_3, %c0_4, %c0_5] : memref<3x3x8x8xf32, #tpu.memory_space<vmem>>, vector<1x1x8x8xf32>
    %8 = vector.shape_cast %7 : vector<1x1x8x8xf32> to vector<8x8xf32>
    %cst = arith.constant dense<0.000000e+00> : vector<48x8xf32>
    %9 = tpu.matmul %4, %8, %cst {dimension_numbers = #tpu.dot_dimension_numbers<[1], [0], [0], [1], [0, 0, 1, 1], [], []>} : vector<48x8xf32>, vector<8x8xf32>, vector<48x8xf32> -> vector<48x8xf32>
    %c0_6 = arith.constant 0 : index
    %c0_7 = arith.constant 0 : index
    %c0_8 = arith.constant 0 : index
    %c0_9 = arith.constant 0 : index
    %10 = vector.load %arg4[%c0_6, %c0_7, %c0_8, %c0_9] : memref<3x3x8x8xf32, #tpu.memory_space<vmem>>, vector<1x1x8x8xf32>
    %11 = vector.shape_cast %10 : vector<1x1x8x8xf32> to vector<8x8xf32>
    %cst_10 = arith.constant dense<0.000000e+00> : vector<40x8xf32>
    %12 = tpu.matmul %5, %11, %cst_10 {dimension_numbers = #tpu.dot_dimension_numbers<[1], [0], [0], [1], [0, 0, 1, 1], [], []>} : vector<40x8xf32>, vector<8x8xf32>, vector<40x8xf32> -> vector<40x8xf32>
    %c2 = arith.constant 2 : index
    %c0_11 = arith.constant 0 : index
    %c0_12 = arith.constant 0 : index
    %c0_13 = arith.constant 0 : index
    %13 = vector.load %arg4[%c2, %c0_11, %c0_12, %c0_13] : memref<3x3x8x8xf32, #tpu.memory_space<vmem>>, vector<1x1x8x8xf32>
    %14 = vector.shape_cast %13 : vector<1x1x8x8xf32> to vector<8x8xf32>
    %cst_14 = arith.constant dense<0.000000e+00> : vector<40x8xf32>
    %15 = tpu.matmul %6, %14, %cst_14 {dimension_numbers = #tpu.dot_dimension_numbers<[1], [0], [0], [1], [0, 0, 1, 1], [], []>} : vector<40x8xf32>, vector<8x8xf32>, vector<40x8xf32> -> vector<40x8xf32>
    %16 = vector.extract_strided_slice %9 {offsets = [0, 0], sizes = [8, 8], strides = [1, 1]} : vector<48x8xf32> to vector<8x8xf32>
    %17 = vector.extract_strided_slice %15 {offsets = [0, 0], sizes = [8, 8], strides = [1, 1]} : vector<40x8xf32> to vector<8x8xf32>
    %18 = arith.addf %16, %17 : vector<8x8xf32>
    %19 = vector.extract_strided_slice %9 {offsets = [40, 0], sizes = [8, 8], strides = [1, 1]} : vector<48x8xf32> to vector<8x8xf32>
    %20 = vector.extract_strided_slice %12 {offsets = [32, 0], sizes = [8, 8], strides = [1, 1]} : vector<40x8xf32> to vector<8x8xf32>
    %21 = arith.addf %19, %20 : vector<8x8xf32>
    %c0_15 = arith.constant 0 : index
    %c0_16 = arith.constant 0 : index
    %c8 = arith.constant 8 : index
    %c0_17 = arith.constant 0 : index
    %22 = vector.load %arg8[%c0_15, %c0_16, %c8, %c0_17] : memref<2x3x64x8xf32, #tpu.memory_space<vmem>>, vector<1x1x8x8xf32>
    %23 = vector.shape_cast %22 : vector<1x1x8x8xf32> to vector<8x8xf32>
    %24 = arith.addf %23, %18 : vector<8x8xf32>
    %c0_18 = arith.constant 0 : index
    %c0_19 = arith.constant 0 : index
    %c8_20 = arith.constant 8 : index
    %c0_21 = arith.constant 0 : index
    %25 = vector.load %arg8[%c0_18, %c0_19, %c8_20, %c0_21] : memref<2x3x64x8xf32, #tpu.memory_space<vmem>>, vector<1x1x8x8xf32>
    %26 = vector.shape_cast %25 : vector<1x1x8x8xf32> to vector<8x8xf32>
    %27 = vector.shape_cast %24 : vector<8x8xf32> to vector<1x1x8x8xf32>
    tpu.vector_store %arg8[%c0_18, %c0_19, %c8_20, %c0_21], %27 {strides = array<i32>} : memref<2x3x64x8xf32, #tpu.memory_space<vmem>>, vector<1x1x8x8xf32>,
    %28 = vector.extract_strided_slice %9 {offsets = [8, 0], sizes = [32, 8], strides = [1, 1]} : vector<48x8xf32> to vector<32x8xf32>
    %29 = vector.extract_strided_slice %12 {offsets = [0, 0], sizes = [32, 8], strides = [1, 1]} : vector<40x8xf32> to vector<32x8xf32>
    %30 = arith.addf %28, %29 : vector<32x8xf32>
    %31 = vector.extract_strided_slice %15 {offsets = [8, 0], sizes = [32, 8], strides = [1, 1]} : vector<40x8xf32> to vector<32x8xf32>
    %32 = arith.addf %30, %31 : vector<32x8xf32>
    %c0_22 = arith.constant 0 : index
    %c0_23 = arith.constant 0 : index
    %c16 = arith.constant 16 : index
    %c0_24 = arith.constant 0 : index
    %33 = vector.load %arg8[%c0_22, %c0_23, %c16, %c0_24] : memref<2x3x64x8xf32, #tpu.memory_space<vmem>>, vector<1x1x32x8xf32>
    %34 = vector.shape_cast %33 : vector<1x1x32x8xf32> to vector<32x8xf32>
    %35 = arith.addf %34, %32 : vector<32x8xf32>
    %c0_25 = arith.constant 0 : index
    %c0_26 = arith.constant 0 : index
    %c16_27 = arith.constant 16 : index
    %c0_28 = arith.constant 0 : index
    %36 = vector.load %arg8[%c0_25, %c0_26, %c16_27, %c0_28] : memref<2x3x64x8xf32, #tpu.memory_space<vmem>>, vector<1x1x32x8xf32>
    %37 = vector.shape_cast %36 : vector<1x1x32x8xf32> to vector<32x8xf32>
    %38 = vector.shape_cast %35 : vector<32x8xf32> to vector<1x1x32x8xf32>
    tpu.vector_store %arg8[%c0_25, %c0_26, %c16_27, %c0_28], %38 {strides = array<i32>} : memref<2x3x64x8xf32, #tpu.memory_space<vmem>>, vector<1x1x32x8xf32>,
    %c0_29 = arith.constant 0 : index
    %c0_30 = arith.constant 0 : index
    %c48 = arith.constant 48 : index
    %c0_31 = arith.constant 0 : index
    %39 = vector.load %arg8[%c0_29, %c0_30, %c48, %c0_31] : memref<2x3x64x8xf32, #tpu.memory_space<vmem>>, vector<1x1x8x8xf32>
    %40 = vector.shape_cast %39 : vector<1x1x8x8xf32> to vector<8x8xf32>
    %41 = arith.addf %40, %21 : vector<8x8xf32>
    %c0_32 = arith.constant 0 : index
    %c0_33 = arith.constant 0 : index
    %c48_34 = arith.constant 48 : index
    %c0_35 = arith.constant 0 : index
    %42 = vector.load %arg8[%c0_32, %c0_33, %c48_34, %c0_35] : memref<2x3x64x8xf32, #tpu.memory_space<vmem>>, vector<1x1x8x8xf32>
    %43 = vector.shape_cast %42 : vector<1x1x8x8xf32> to vector<8x8xf32>
    %44 = vector.shape_cast %41 : vector<8x8xf32> to vector<1x1x8x8xf32>
    tpu.vector_store %arg8[%c0_32, %c0_33, %c48_34, %c0_35], %44 {strides = array<i32>} : memref<2x3x64x8xf32, #tpu.memory_space<vmem>>, vector<1x1x8x8xf32>,
    %c1_36 = arith.constant 1 : index
    %c1_37 = arith.constant 1 : index
    %c0_38 = arith.constant 0 : index
    %c0_39 = arith.constant 0 : index
    %45 = vector.load %arg4[%c1_36, %c1_37, %c0_38, %c0_39] : memref<3x3x8x8xf32, #tpu.memory_space<vmem>>, vector<1x1x8x8xf32>
    %46 = vector.shape_cast %45 : vector<1x1x8x8xf32> to vector<8x8xf32>
    %cst_40 = arith.constant dense<0.000000e+00> : vector<48x8xf32>
    %47 = tpu.matmul %4, %46, %cst_40 {dimension_numbers = #tpu.dot_dimension_numbers<[1], [0], [0], [1], [0, 0, 1, 1], [], []>} : vector<48x8xf32>, vector<8x8xf32>, vector<48x8xf32> -> vector<48x8xf32>
    %c0_41 = arith.constant 0 : index
    %c1_42 = arith.constant 1 : index
    %c0_43 = arith.constant 0 : index
    %c0_44 = arith.constant 0 : index
    %48 = vector.load %arg4[%c0_41, %c1_42, %c0_43, %c0_44] : memref<3x3x8x8xf32, #tpu.memory_space<vmem>>, vector<1x1x8x8xf32>
    %49 = vector.shape_cast %48 : vector<1x1x8x8xf32> to vector<8x8xf32>
    %cst_45 = arith.constant dense<0.000000e+00> : vector<40x8xf32>
    %50 = tpu.matmul %5, %49, %cst_45 {dimension_numbers = #tpu.dot_dimension_numbers<[1], [0], [0], [1], [0, 0, 1, 1], [], []>} : vector<40x8xf32>, vector<8x8xf32>, vector<40x8xf32> -> vector<40x8xf32>
    %c2_46 = arith.constant 2 : index
    %c1_47 = arith.constant 1 : index
    %c0_48 = arith.constant 0 : index
    %c0_49 = arith.constant 0 : index
    %51 = vector.load %arg4[%c2_46, %c1_47, %c0_48, %c0_49] : memref<3x3x8x8xf32, #tpu.memory_space<vmem>>, vector<1x1x8x8xf32>
    %52 = vector.shape_cast %51 : vector<1x1x8x8xf32> to vector<8x8xf32>
    %cst_50 = arith.constant dense<0.000000e+00> : vector<40x8xf32>
    %53 = tpu.matmul %6, %52, %cst_50 {dimension_numbers = #tpu.dot_dimension_numbers<[1], [0], [0], [1], [0, 0, 1, 1], [], []>} : vector<40x8xf32>, vector<8x8xf32>, vector<40x8xf32> -> vector<40x8xf32>
    %54 = vector.extract_strided_slice %47 {offsets = [0, 0], sizes = [8, 8], strides = [1, 1]} : vector<48x8xf32> to vector<8x8xf32>
    %55 = vector.extract_strided_slice %53 {offsets = [0, 0], sizes = [8, 8], strides = [1, 1]} : vector<40x8xf32> to vector<8x8xf32>
    %56 = arith.addf %54, %55 : vector<8x8xf32>
    %57 = vector.extract_strided_slice %47 {offsets = [40, 0], sizes = [8, 8], strides = [1, 1]} : vector<48x8xf32> to vector<8x8xf32>
    %58 = vector.extract_strided_slice %50 {offsets = [32, 0], sizes = [8, 8], strides = [1, 1]} : vector<40x8xf32> to vector<8x8xf32>
    %59 = arith.addf %57, %58 : vector<8x8xf32>
    %c0_51 = arith.constant 0 : index
    %c1_52 = arith.constant 1 : index
    %c8_53 = arith.constant 8 : index
    %c0_54 = arith.constant 0 : index
    %60 = vector.load %arg8[%c0_51, %c1_52, %c8_53, %c0_54] : memref<2x3x64x8xf32, #tpu.memory_space<vmem>>, vector<1x1x8x8xf32>
    %61 = vector.shape_cast %60 : vector<1x1x8x8xf32> to vector<8x8xf32>
    %62 = arith.addf %61, %56 : vector<8x8xf32>
    %c0_55 = arith.constant 0 : index
    %c1_56 = arith.constant 1 : index
    %c8_57 = arith.constant 8 : index
    %c0_58 = arith.constant 0 : index
    %63 = vector.load %arg8[%c0_55, %c1_56, %c8_57, %c0_58] : memref<2x3x64x8xf32, #tpu.memory_space<vmem>>, vector<1x1x8x8xf32>
    %64 = vector.shape_cast %63 : vector<1x1x8x8xf32> to vector<8x8xf32>
    %65 = vector.shape_cast %62 : vector<8x8xf32> to vector<1x1x8x8xf32>
    tpu.vector_store %arg8[%c0_55, %c1_56, %c8_57, %c0_58], %65 {strides = array<i32>} : memref<2x3x64x8xf32, #tpu.memory_space<vmem>>, vector<1x1x8x8xf32>,
    %66 = vector.extract_strided_slice %47 {offsets = [8, 0], sizes = [32, 8], strides = [1, 1]} : vector<48x8xf32> to vector<32x8xf32>
    %67 = vector.extract_strided_slice %50 {offsets = [0, 0], sizes = [32, 8], strides = [1, 1]} : vector<40x8xf32> to vector<32x8xf32>
    %68 = arith.addf %66, %67 : vector<32x8xf32>
    %69 = vector.extract_strided_slice %53 {offsets = [8, 0], sizes = [32, 8], strides = [1, 1]} : vector<40x8xf32> to vector<32x8xf32>
    %70 = arith.addf %68, %69 : vector<32x8xf32>
    %c0_59 = arith.constant 0 : index
    %c1_60 = arith.constant 1 : index
    %c16_61 = arith.constant 16 : index
    %c0_62 = arith.constant 0 : index
    %71 = vector.load %arg8[%c0_59, %c1_60, %c16_61, %c0_62] : memref<2x3x64x8xf32, #tpu.memory_space<vmem>>, vector<1x1x32x8xf32>
    %72 = vector.shape_cast %71 : vector<1x1x32x8xf32> to vector<32x8xf32>
    %73 = arith.addf %72, %70 : vector<32x8xf32>
    %c0_63 = arith.constant 0 : index
    %c1_64 = arith.constant 1 : index
    %c16_65 = arith.constant 16 : index
    %c0_66 = arith.constant 0 : index
    %74 = vector.load %arg8[%c0_63, %c1_64, %c16_65, %c0_66] : memref<2x3x64x8xf32, #tpu.memory_space<vmem>>, vector<1x1x32x8xf32>
    %75 = vector.shape_cast %74 : vector<1x1x32x8xf32> to vector<32x8xf32>
    %76 = vector.shape_cast %73 : vector<32x8xf32> to vector<1x1x32x8xf32>
    tpu.vector_store %arg8[%c0_63, %c1_64, %c16_65, %c0_66], %76 {strides = array<i32>} : memref<2x3x64x8xf32, #tpu.memory_space<vmem>>, vector<1x1x32x8xf32>,
    %c0_67 = arith.constant 0 : index
    %c1_68 = arith.constant 1 : index
    %c48_69 = arith.constant 48 : index
    %c0_70 = arith.constant 0 : index
    %77 = vector.load %arg8[%c0_67, %c1_68, %c48_69, %c0_70] : memref<2x3x64x8xf32, #tpu.memory_space<vmem>>, vector<1x1x8x8xf32>
    %78 = vector.shape_cast %77 : vector<1x1x8x8xf32> to vector<8x8xf32>
    %79 = arith.addf %78, %59 : vector<8x8xf32>
    %c0_71 = arith.constant 0 : index
    %c1_72 = arith.constant 1 : index
    %c48_73 = arith.constant 48 : index
    %c0_74 = arith.constant 0 : index
    %80 = vector.load %arg8[%c0_71, %c1_72, %c48_73, %c0_74] : memref<2x3x64x8xf32, #tpu.memory_space<vmem>>, vector<1x1x8x8xf32>
    %81 = vector.shape_cast %80 : vector<1x1x8x8xf32> to vector<8x8xf32>
    %82 = vector.shape_cast %79 : vector<8x8xf32> to vector<1x1x8x8xf32>
    tpu.vector_store %arg8[%c0_71, %c1_72, %c48_73, %c0_74], %82 {strides = array<i32>} : memref<2x3x64x8xf32, #tpu.memory_space<vmem>>, vector<1x1x8x8xf32>,
    %c1_75 = arith.constant 1 : index
    %c2_76 = arith.constant 2 : index
    %c0_77 = arith.constant 0 : index
    %c0_78 = arith.constant 0 : index
    %83 = vector.load %arg4[%c1_75, %c2_76, %c0_77, %c0_78] : memref<3x3x8x8xf32, #tpu.memory_space<vmem>>, vector<1x1x8x8xf32>
    %84 = vector.shape_cast %83 : vector<1x1x8x8xf32> to vector<8x8xf32>
    %cst_79 = arith.constant dense<0.000000e+00> : vector<48x8xf32>
    %85 = tpu.matmul %4, %84, %cst_79 {dimension_numbers = #tpu.dot_dimension_numbers<[1], [0], [0], [1], [0, 0, 1, 1], [], []>} : vector<48x8xf32>, vector<8x8xf32>, vector<48x8xf32> -> vector<48x8xf32>
    %c0_80 = arith.constant 0 : index
    %c2_81 = arith.constant 2 : index
    %c0_82 = arith.constant 0 : index
    %c0_83 = arith.constant 0 : index
    %86 = vector.load %arg4[%c0_80, %c2_81, %c0_82, %c0_83] : memref<3x3x8x8xf32, #tpu.memory_space<vmem>>, vector<1x1x8x8xf32>
    %87 = vector.shape_cast %86 : vector<1x1x8x8xf32> to vector<8x8xf32>
    %cst_84 = arith.constant dense<0.000000e+00> : vector<40x8xf32>
    %88 = tpu.matmul %5, %87, %cst_84 {dimension_numbers = #tpu.dot_dimension_numbers<[1], [0], [0], [1], [0, 0, 1, 1], [], []>} : vector<40x8xf32>, vector<8x8xf32>, vector<40x8xf32> -> vector<40x8xf32>
    %c2_85 = arith.constant 2 : index
    %c2_86 = arith.constant 2 : index
    %c0_87 = arith.constant 0 : index
    %c0_88 = arith.constant 0 : index
    %89 = vector.load %arg4[%c2_85, %c2_86, %c0_87, %c0_88] : memref<3x3x8x8xf32, #tpu.memory_space<vmem>>, vector<1x1x8x8xf32>
    %90 = vector.shape_cast %89 : vector<1x1x8x8xf32> to vector<8x8xf32>
    %cst_89 = arith.constant dense<0.000000e+00> : vector<40x8xf32>
    %91 = tpu.matmul %6, %90, %cst_89 {dimension_numbers = #tpu.dot_dimension_numbers<[1], [0], [0], [1], [0, 0, 1, 1], [], []>} : vector<40x8xf32>, vector<8x8xf32>, vector<40x8xf32> -> vector<40x8xf32>
    %92 = vector.extract_strided_slice %85 {offsets = [0, 0], sizes = [8, 8], strides = [1, 1]} : vector<48x8xf32> to vector<8x8xf32>
    %93 = vector.extract_strided_slice %91 {offsets = [0, 0], sizes = [8, 8], strides = [1, 1]} : vector<40x8xf32> to vector<8x8xf32>
    %94 = arith.addf %92, %93 : vector<8x8xf32>
    %95 = vector.extract_strided_slice %85 {offsets = [40, 0], sizes = [8, 8], strides = [1, 1]} : vector<48x8xf32> to vector<8x8xf32>
    %96 = vector.extract_strided_slice %88 {offsets = [32, 0], sizes = [8, 8], strides = [1, 1]} : vector<40x8xf32> to vector<8x8xf32>
    %97 = arith.addf %95, %96 : vector<8x8xf32>
    %c0_90 = arith.constant 0 : index
    %c2_91 = arith.constant 2 : index
    %c8_92 = arith.constant 8 : index
    %c0_93 = arith.constant 0 : index
    %98 = vector.load %arg8[%c0_90, %c2_91, %c8_92, %c0_93] : memref<2x3x64x8xf32, #tpu.memory_space<vmem>>, vector<1x1x8x8xf32>
    %99 = vector.shape_cast %98 : vector<1x1x8x8xf32> to vector<8x8xf32>
    %100 = arith.addf %99, %94 : vector<8x8xf32>
    %c0_94 = arith.constant 0 : index
    %c2_95 = arith.constant 2 : index
    %c8_96 = arith.constant 8 : index
    %c0_97 = arith.constant 0 : index
    %101 = vector.load %arg8[%c0_94, %c2_95, %c8_96, %c0_97] : memref<2x3x64x8xf32, #tpu.memory_space<vmem>>, vector<1x1x8x8xf32>
    %102 = vector.shape_cast %101 : vector<1x1x8x8xf32> to vector<8x8xf32>
    %103 = vector.shape_cast %100 : vector<8x8xf32> to vector<1x1x8x8xf32>
    tpu.vector_store %arg8[%c0_94, %c2_95, %c8_96, %c0_97], %103 {strides = array<i32>} : memref<2x3x64x8xf32, #tpu.memory_space<vmem>>, vector<1x1x8x8xf32>,
    %104 = vector.extract_strided_slice %85 {offsets = [8, 0], sizes = [32, 8], strides = [1, 1]} : vector<48x8xf32> to vector<32x8xf32>
    %105 = vector.extract_strided_slice %88 {offsets = [0, 0], sizes = [32, 8], strides = [1, 1]} : vector<40x8xf32> to vector<32x8xf32>
    %106 = arith.addf %104, %105 : vector<32x8xf32>
    %107 = vector.extract_strided_slice %91 {offsets = [8, 0], sizes = [32, 8], strides = [1, 1]} : vector<40x8xf32> to vector<32x8xf32>
    %108 = arith.addf %106, %107 : vector<32x8xf32>
    %c0_98 = arith.constant 0 : index
    %c2_99 = arith.constant 2 : index
    %c16_100 = arith.constant 16 : index
    %c0_101 = arith.constant 0 : index
    %109 = vector.load %arg8[%c0_98, %c2_99, %c16_100, %c0_101] : memref<2x3x64x8xf32, #tpu.memory_space<vmem>>, vector<1x1x32x8xf32>
    %110 = vector.shape_cast %109 : vector<1x1x32x8xf32> to vector<32x8xf32>
    %111 = arith.addf %110, %108 : vector<32x8xf32>
    %c0_102 = arith.constant 0 : index
    %c2_103 = arith.constant 2 : index
    %c16_104 = arith.constant 16 : index
    %c0_105 = arith.constant 0 : index
    %112 = vector.load %arg8[%c0_102, %c2_103, %c16_104, %c0_105] : memref<2x3x64x8xf32, #tpu.memory_space<vmem>>, vector<1x1x32x8xf32>
    %113 = vector.shape_cast %112 : vector<1x1x32x8xf32> to vector<32x8xf32>
    %114 = vector.shape_cast %111 : vector<32x8xf32> to vector<1x1x32x8xf32>
    tpu.vector_store %arg8[%c0_102, %c2_103, %c16_104, %c0_105], %114 {strides = array<i32>} : memref<2x3x64x8xf32, #tpu.memory_space<vmem>>, vector<1x1x32x8xf32>,
    %c0_106 = arith.constant 0 : index
    %c2_107 = arith.constant 2 : index
    %c48_108 = arith.constant 48 : index
    %c0_109 = arith.constant 0 : index
    %115 = vector.load %arg8[%c0_106, %c2_107, %c48_108, %c0_109] : memref<2x3x64x8xf32, #tpu.memory_space<vmem>>, vector<1x1x8x8xf32>
    %116 = vector.shape_cast %115 : vector<1x1x8x8xf32> to vector<8x8xf32>
    %117 = arith.addf %116, %97 : vector<8x8xf32>
    %c0_110 = arith.constant 0 : index
    %c2_111 = arith.constant 2 : index
    %c48_112 = arith.constant 48 : index
    %c0_113 = arith.constant 0 : index
    %118 = vector.load %arg8[%c0_110, %c2_111, %c48_112, %c0_113] : memref<2x3x64x8xf32, #tpu.memory_space<vmem>>, vector<1x1x8x8xf32>
    %119 = vector.shape_cast %118 : vector<1x1x8x8xf32> to vector<8x8xf32>
    %120 = vector.shape_cast %117 : vector<8x8xf32> to vector<1x1x8x8xf32>
    tpu.vector_store %arg8[%c0_110, %c2_111, %c48_112, %c0_113], %120 {strides = array<i32>} : memref<2x3x64x8xf32, #tpu.memory_space<vmem>>, vector<1x1x8x8xf32>,
    %c1_114 = arith.constant 1 : index
    %c0_115 = arith.constant 0 : index
    %c0_116 = arith.constant 0 : index
    %121 = vector.load %arg3[%c1_114, %c0_115, %c0_116] : memref<2x48x8xf32, #tpu.memory_space<vmem>>, vector<1x48x8xf32>
    %122 = vector.shape_cast %121 : vector<1x48x8xf32> to vector<48x8xf32>
    %123 = vector.extract_strided_slice %122 {offsets = [0, 0], sizes = [40, 8], strides = [1, 1]} : vector<48x8xf32> to vector<40x8xf32>
    %124 = vector.extract_strided_slice %122 {offsets = [8, 0], sizes = [40, 8], strides = [1, 1]} : vector<48x8xf32> to vector<40x8xf32>
    %c1_117 = arith.constant 1 : index
    %c0_118 = arith.constant 0 : index
    %c0_119 = arith.constant 0 : index
    %c0_120 = arith.constant 0 : index
    %125 = vector.load %arg4[%c1_117, %c0_118, %c0_119, %c0_120] : memref<3x3x8x8xf32, #tpu.memory_space<vmem>>, vector<1x1x8x8xf32>
    %126 = vector.shape_cast %125 : vector<1x1x8x8xf32> to vector<8x8xf32>
    %cst_121 = arith.constant dense<0.000000e+00> : vector<48x8xf32>
    %127 = tpu.matmul %122, %126, %cst_121 {dimension_numbers = #tpu.dot_dimension_numbers<[1], [0], [0], [1], [0, 0, 1, 1], [], []>} : vector<48x8xf32>, vector<8x8xf32>, vector<48x8xf32> -> vector<48x8xf32>
    %c0_122 = arith.constant 0 : index
    %c0_123 = arith.constant 0 : index
    %c0_124 = arith.constant 0 : index
    %c0_125 = arith.constant 0 : index
    %128 = vector.load %arg4[%c0_122, %c0_123, %c0_124, %c0_125] : memref<3x3x8x8xf32, #tpu.memory_space<vmem>>, vector<1x1x8x8xf32>
    %129 = vector.shape_cast %128 : vector<1x1x8x8xf32> to vector<8x8xf32>
    %cst_126 = arith.constant dense<0.000000e+00> : vector<40x8xf32>
    %130 = tpu.matmul %123, %129, %cst_126 {dimension_numbers = #tpu.dot_dimension_numbers<[1], [0], [0], [1], [0, 0, 1, 1], [], []>} : vector<40x8xf32>, vector<8x8xf32>, vector<40x8xf32> -> vector<40x8xf32>
    %c2_127 = arith.constant 2 : index
    %c0_128 = arith.constant 0 : index
    %c0_129 = arith.constant 0 : index
    %c0_130 = arith.constant 0 : index
    %131 = vector.load %arg4[%c2_127, %c0_128, %c0_129, %c0_130] : memref<3x3x8x8xf32, #tpu.memory_space<vmem>>, vector<1x1x8x8xf32>
    %132 = vector.shape_cast %131 : vector<1x1x8x8xf32> to vector<8x8xf32>
    %cst_131 = arith.constant dense<0.000000e+00> : vector<40x8xf32>
    %133 = tpu.matmul %124, %132, %cst_131 {dimension_numbers = #tpu.dot_dimension_numbers<[1], [0], [0], [1], [0, 0, 1, 1], [], []>} : vector<40x8xf32>, vector<8x8xf32>, vector<40x8xf32> -> vector<40x8xf32>
    %134 = vector.extract_strided_slice %127 {offsets = [0, 0], sizes = [8, 8], strides = [1, 1]} : vector<48x8xf32> to vector<8x8xf32>
    %135 = vector.extract_strided_slice %133 {offsets = [0, 0], sizes = [8, 8], strides = [1, 1]} : vector<40x8xf32> to vector<8x8xf32>
    %136 = arith.addf %134, %135 : vector<8x8xf32>
    %137 = vector.extract_strided_slice %127 {offsets = [40, 0], sizes = [8, 8], strides = [1, 1]} : vector<48x8xf32> to vector<8x8xf32>
    %138 = vector.extract_strided_slice %130 {offsets = [32, 0], sizes = [8, 8], strides = [1, 1]} : vector<40x8xf32> to vector<8x8xf32>
    %139 = arith.addf %137, %138 : vector<8x8xf32>
    %c1_132 = arith.constant 1 : index
    %c0_133 = arith.constant 0 : index
    %c8_134 = arith.constant 8 : index
    %c0_135 = arith.constant 0 : index
    %140 = vector.load %arg8[%c1_132, %c0_133, %c8_134, %c0_135] : memref<2x3x64x8xf32, #tpu.memory_space<vmem>>, vector<1x1x8x8xf32>
    %141 = vector.shape_cast %140 : vector<1x1x8x8xf32> to vector<8x8xf32>
    %142 = arith.addf %141, %136 : vector<8x8xf32>
    %c1_136 = arith.constant 1 : index
    %c0_137 = arith.constant 0 : index
    %c8_138 = arith.constant 8 : index
    %c0_139 = arith.constant 0 : index
    %143 = vector.load %arg8[%c1_136, %c0_137, %c8_138, %c0_139] : memref<2x3x64x8xf32, #tpu.memory_space<vmem>>, vector<1x1x8x8xf32>
    %144 = vector.shape_cast %143 : vector<1x1x8x8xf32> to vector<8x8xf32>
    %145 = vector.shape_cast %142 : vector<8x8xf32> to vector<1x1x8x8xf32>
    tpu.vector_store %arg8[%c1_136, %c0_137, %c8_138, %c0_139], %145 {strides = array<i32>} : memref<2x3x64x8xf32, #tpu.memory_space<vmem>>, vector<1x1x8x8xf32>,
    %146 = vector.extract_strided_slice %127 {offsets = [8, 0], sizes = [32, 8], strides = [1, 1]} : vector<48x8xf32> to vector<32x8xf32>
    %147 = vector.extract_strided_slice %130 {offsets = [0, 0], sizes = [32, 8], strides = [1, 1]} : vector<40x8xf32> to vector<32x8xf32>
    %148 = arith.addf %146, %147 : vector<32x8xf32>
    %149 = vector.extract_strided_slice %133 {offsets = [8, 0], sizes = [32, 8], strides = [1, 1]} : vector<40x8xf32> to vector<32x8xf32>
    %150 = arith.addf %148, %149 : vector<32x8xf32>
    %c1_140 = arith.constant 1 : index
    %c0_141 = arith.constant 0 : index
    %c16_142 = arith.constant 16 : index
    %c0_143 = arith.constant 0 : index
    %151 = vector.load %arg8[%c1_140, %c0_141, %c16_142, %c0_143] : memref<2x3x64x8xf32, #tpu.memory_space<vmem>>, vector<1x1x32x8xf32>
    %152 = vector.shape_cast %151 : vector<1x1x32x8xf32> to vector<32x8xf32>
    %153 = arith.addf %152, %150 : vector<32x8xf32>
    %c1_144 = arith.constant 1 : index
    %c0_145 = arith.constant 0 : index
    %c16_146 = arith.constant 16 : index
    %c0_147 = arith.constant 0 : index
    %154 = vector.load %arg8[%c1_144, %c0_145, %c16_146, %c0_147] : memref<2x3x64x8xf32, #tpu.memory_space<vmem>>, vector<1x1x32x8xf32>
    %155 = vector.shape_cast %154 : vector<1x1x32x8xf32> to vector<32x8xf32>
    %156 = vector.shape_cast %153 : vector<32x8xf32> to vector<1x1x32x8xf32>
    tpu.vector_store %arg8[%c1_144, %c0_145, %c16_146, %c0_147], %156 {strides = array<i32>} : memref<2x3x64x8xf32, #tpu.memory_space<vmem>>, vector<1x1x32x8xf32>,
    %c1_148 = arith.constant 1 : index
    %c0_149 = arith.constant 0 : index
    %c48_150 = arith.constant 48 : index
    %c0_151 = arith.constant 0 : index
    %157 = vector.load %arg8[%c1_148, %c0_149, %c48_150, %c0_151] : memref<2x3x64x8xf32, #tpu.memory_space<vmem>>, vector<1x1x8x8xf32>
    %158 = vector.shape_cast %157 : vector<1x1x8x8xf32> to vector<8x8xf32>
    %159 = arith.addf %158, %139 : vector<8x8xf32>
    %c1_152 = arith.constant 1 : index
    %c0_153 = arith.constant 0 : index
    %c48_154 = arith.constant 48 : index
    %c0_155 = arith.constant 0 : index
    %160 = vector.load %arg8[%c1_152, %c0_153, %c48_154, %c0_155] : memref<2x3x64x8xf32, #tpu.memory_space<vmem>>, vector<1x1x8x8xf32>
    %161 = vector.shape_cast %160 : vector<1x1x8x8xf32> to vector<8x8xf32>
    %162 = vector.shape_cast %159 : vector<8x8xf32> to vector<1x1x8x8xf32>
    tpu.vector_store %arg8[%c1_152, %c0_153, %c48_154, %c0_155], %162 {strides = array<i32>} : memref<2x3x64x8xf32, #tpu.memory_space<vmem>>, vector<1x1x8x8xf32>,
    %c1_156 = arith.constant 1 : index
    %c1_157 = arith.constant 1 : index
    %c0_158 = arith.constant 0 : index
    %c0_159 = arith.constant 0 : index
    %163 = vector.load %arg4[%c1_156, %c1_157, %c0_158, %c0_159] : memref<3x3x8x8xf32, #tpu.memory_space<vmem>>, vector<1x1x8x8xf32>
    %164 = vector.shape_cast %163 : vector<1x1x8x8xf32> to vector<8x8xf32>
    %cst_160 = arith.constant dense<0.000000e+00> : vector<48x8xf32>
    %165 = tpu.matmul %122, %164, %cst_160 {dimension_numbers = #tpu.dot_dimension_numbers<[1], [0], [0], [1], [0, 0, 1, 1], [], []>} : vector<48x8xf32>, vector<8x8xf32>, vector<48x8xf32> -> vector<48x8xf32>
    %c0_161 = arith.constant 0 : index
    %c1_162 = arith.constant 1 : index
    %c0_163 = arith.constant 0 : index
    %c0_164 = arith.constant 0 : index
    %166 = vector.load %arg4[%c0_161, %c1_162, %c0_163, %c0_164] : memref<3x3x8x8xf32, #tpu.memory_space<vmem>>, vector<1x1x8x8xf32>
    %167 = vector.shape_cast %166 : vector<1x1x8x8xf32> to vector<8x8xf32>
    %cst_165 = arith.constant dense<0.000000e+00> : vector<40x8xf32>
    %168 = tpu.matmul %123, %167, %cst_165 {dimension_numbers = #tpu.dot_dimension_numbers<[1], [0], [0], [1], [0, 0, 1, 1], [], []>} : vector<40x8xf32>, vector<8x8xf32>, vector<40x8xf32> -> vector<40x8xf32>
    %c2_166 = arith.constant 2 : index
    %c1_167 = arith.constant 1 : index
    %c0_168 = arith.constant 0 : index
    %c0_169 = arith.constant 0 : index
    %169 = vector.load %arg4[%c2_166, %c1_167, %c0_168, %c0_169] : memref<3x3x8x8xf32, #tpu.memory_space<vmem>>, vector<1x1x8x8xf32>
    %170 = vector.shape_cast %169 : vector<1x1x8x8xf32> to vector<8x8xf32>
    %cst_170 = arith.constant dense<0.000000e+00> : vector<40x8xf32>
    %171 = tpu.matmul %124, %170, %cst_170 {dimension_numbers = #tpu.dot_dimension_numbers<[1], [0], [0], [1], [0, 0, 1, 1], [], []>} : vector<40x8xf32>, vector<8x8xf32>, vector<40x8xf32> -> vector<40x8xf32>
    %172 = vector.extract_strided_slice %165 {offsets = [0, 0], sizes = [8, 8], strides = [1, 1]} : vector<48x8xf32> to vector<8x8xf32>
    %173 = vector.extract_strided_slice %171 {offsets = [0, 0], sizes = [8, 8], strides = [1, 1]} : vector<40x8xf32> to vector<8x8xf32>
    %174 = arith.addf %172, %173 : vector<8x8xf32>
    %175 = vector.extract_strided_slice %165 {offsets = [40, 0], sizes = [8, 8], strides = [1, 1]} : vector<48x8xf32> to vector<8x8xf32>
    %176 = vector.extract_strided_slice %168 {offsets = [32, 0], sizes = [8, 8], strides = [1, 1]} : vector<40x8xf32> to vector<8x8xf32>
    %177 = arith.addf %175, %176 : vector<8x8xf32>
    %c1_171 = arith.constant 1 : index
    %c1_172 = arith.constant 1 : index
    %c8_173 = arith.constant 8 : index
    %c0_174 = arith.constant 0 : index
    %178 = vector.load %arg8[%c1_171, %c1_172, %c8_173, %c0_174] : memref<2x3x64x8xf32, #tpu.memory_space<vmem>>, vector<1x1x8x8xf32>
    %179 = vector.shape_cast %178 : vector<1x1x8x8xf32> to vector<8x8xf32>
    %180 = arith.addf %179, %174 : vector<8x8xf32>
    %c1_175 = arith.constant 1 : index
    %c1_176 = arith.constant 1 : index
    %c8_177 = arith.constant 8 : index
    %c0_178 = arith.constant 0 : index
    %181 = vector.load %arg8[%c1_175, %c1_176, %c8_177, %c0_178] : memref<2x3x64x8xf32, #tpu.memory_space<vmem>>, vector<1x1x8x8xf32>
    %182 = vector.shape_cast %181 : vector<1x1x8x8xf32> to vector<8x8xf32>
    %183 = vector.shape_cast %180 : vector<8x8xf32> to vector<1x1x8x8xf32>
    tpu.vector_store %arg8[%c1_175, %c1_176, %c8_177, %c0_178], %183 {strides = array<i32>} : memref<2x3x64x8xf32, #tpu.memory_space<vmem>>, vector<1x1x8x8xf32>,
    %184 = vector.extract_strided_slice %165 {offsets = [8, 0], sizes = [32, 8], strides = [1, 1]} : vector<48x8xf32> to vector<32x8xf32>
    %185 = vector.extract_strided_slice %168 {offsets = [0, 0], sizes = [32, 8], strides = [1, 1]} : vector<40x8xf32> to vector<32x8xf32>
    %186 = arith.addf %184, %185 : vector<32x8xf32>
    %187 = vector.extract_strided_slice %171 {offsets = [8, 0], sizes = [32, 8], strides = [1, 1]} : vector<40x8xf32> to vector<32x8xf32>
    %188 = arith.addf %186, %187 : vector<32x8xf32>
    %c1_179 = arith.constant 1 : index
    %c1_180 = arith.constant 1 : index
    %c16_181 = arith.constant 16 : index
    %c0_182 = arith.constant 0 : index
    %189 = vector.load %arg8[%c1_179, %c1_180, %c16_181, %c0_182] : memref<2x3x64x8xf32, #tpu.memory_space<vmem>>, vector<1x1x32x8xf32>
    %190 = vector.shape_cast %189 : vector<1x1x32x8xf32> to vector<32x8xf32>
    %191 = arith.addf %190, %188 : vector<32x8xf32>
    %c1_183 = arith.constant 1 : index
    %c1_184 = arith.constant 1 : index
    %c16_185 = arith.constant 16 : index
    %c0_186 = arith.constant 0 : index
    %192 = vector.load %arg8[%c1_183, %c1_184, %c16_185, %c0_186] : memref<2x3x64x8xf32, #tpu.memory_space<vmem>>, vector<1x1x32x8xf32>
    %193 = vector.shape_cast %192 : vector<1x1x32x8xf32> to vector<32x8xf32>
    %194 = vector.shape_cast %191 : vector<32x8xf32> to vector<1x1x32x8xf32>
    tpu.vector_store %arg8[%c1_183, %c1_184, %c16_185, %c0_186], %194 {strides = array<i32>} : memref<2x3x64x8xf32, #tpu.memory_space<vmem>>, vector<1x1x32x8xf32>,
    %c1_187 = arith.constant 1 : index
    %c1_188 = arith.constant 1 : index
    %c48_189 = arith.constant 48 : index
    %c0_190 = arith.constant 0 : index
    %195 = vector.load %arg8[%c1_187, %c1_188, %c48_189, %c0_190] : memref<2x3x64x8xf32, #tpu.memory_space<vmem>>, vector<1x1x8x8xf32>
    %196 = vector.shape_cast %195 : vector<1x1x8x8xf32> to vector<8x8xf32>
    %197 = arith.addf %196, %177 : vector<8x8xf32>
    %c1_191 = arith.constant 1 : index
    %c1_192 = arith.constant 1 : index
    %c48_193 = arith.constant 48 : index
    %c0_194 = arith.constant 0 : index
    %198 = vector.load %arg8[%c1_191, %c1_192, %c48_193, %c0_194] : memref<2x3x64x8xf32, #tpu.memory_space<vmem>>, vector<1x1x8x8xf32>
    %199 = vector.shape_cast %198 : vector<1x1x8x8xf32> to vector<8x8xf32>
    %200 = vector.shape_cast %197 : vector<8x8xf32> to vector<1x1x8x8xf32>
    tpu.vector_store %arg8[%c1_191, %c1_192, %c48_193, %c0_194], %200 {strides = array<i32>} : memref<2x3x64x8xf32, #tpu.memory_space<vmem>>, vector<1x1x8x8xf32>,
    %c1_195 = arith.constant 1 : index
    %c2_196 = arith.constant 2 : index
    %c0_197 = arith.constant 0 : index
    %c0_198 = arith.constant 0 : index
    %201 = vector.load %arg4[%c1_195, %c2_196, %c0_197, %c0_198] : memref<3x3x8x8xf32, #tpu.memory_space<vmem>>, vector<1x1x8x8xf32>
    %202 = vector.shape_cast %201 : vector<1x1x8x8xf32> to vector<8x8xf32>
    %cst_199 = arith.constant dense<0.000000e+00> : vector<48x8xf32>
    %203 = tpu.matmul %122, %202, %cst_199 {dimension_numbers = #tpu.dot_dimension_numbers<[1], [0], [0], [1], [0, 0, 1, 1], [], []>} : vector<48x8xf32>, vector<8x8xf32>, vector<48x8xf32> -> vector<48x8xf32>
    %c0_200 = arith.constant 0 : index
    %c2_201 = arith.constant 2 : index
    %c0_202 = arith.constant 0 : index
    %c0_203 = arith.constant 0 : index
    %204 = vector.load %arg4[%c0_200, %c2_201, %c0_202, %c0_203] : memref<3x3x8x8xf32, #tpu.memory_space<vmem>>, vector<1x1x8x8xf32>
    %205 = vector.shape_cast %204 : vector<1x1x8x8xf32> to vector<8x8xf32>
    %cst_204 = arith.constant dense<0.000000e+00> : vector<40x8xf32>
    %206 = tpu.matmul %123, %205, %cst_204 {dimension_numbers = #tpu.dot_dimension_numbers<[1], [0], [0], [1], [0, 0, 1, 1], [], []>} : vector<40x8xf32>, vector<8x8xf32>, vector<40x8xf32> -> vector<40x8xf32>
    %c2_205 = arith.constant 2 : index
    %c2_206 = arith.constant 2 : index
    %c0_207 = arith.constant 0 : index
    %c0_208 = arith.constant 0 : index
    %207 = vector.load %arg4[%c2_205, %c2_206, %c0_207, %c0_208] : memref<3x3x8x8xf32, #tpu.memory_space<vmem>>, vector<1x1x8x8xf32>
    %208 = vector.shape_cast %207 : vector<1x1x8x8xf32> to vector<8x8xf32>
    %cst_209 = arith.constant dense<0.000000e+00> : vector<40x8xf32>
    %209 = tpu.matmul %124, %208, %cst_209 {dimension_numbers = #tpu.dot_dimension_numbers<[1], [0], [0], [1], [0, 0, 1, 1], [], []>} : vector<40x8xf32>, vector<8x8xf32>, vector<40x8xf32> -> vector<40x8xf32>
    %210 = vector.extract_strided_slice %203 {offsets = [0, 0], sizes = [8, 8], strides = [1, 1]} : vector<48x8xf32> to vector<8x8xf32>
    %211 = vector.extract_strided_slice %209 {offsets = [0, 0], sizes = [8, 8], strides = [1, 1]} : vector<40x8xf32> to vector<8x8xf32>
    %212 = arith.addf %210, %211 : vector<8x8xf32>
    %213 = vector.extract_strided_slice %203 {offsets = [40, 0], sizes = [8, 8], strides = [1, 1]} : vector<48x8xf32> to vector<8x8xf32>
    %214 = vector.extract_strided_slice %206 {offsets = [32, 0], sizes = [8, 8], strides = [1, 1]} : vector<40x8xf32> to vector<8x8xf32>
    %215 = arith.addf %213, %214 : vector<8x8xf32>
    %c1_210 = arith.constant 1 : index
    %c2_211 = arith.constant 2 : index
    %c8_212 = arith.constant 8 : index
    %c0_213 = arith.constant 0 : index
    %216 = vector.load %arg8[%c1_210, %c2_211, %c8_212, %c0_213] : memref<2x3x64x8xf32, #tpu.memory_space<vmem>>, vector<1x1x8x8xf32>
    %217 = vector.shape_cast %216 : vector<1x1x8x8xf32> to vector<8x8xf32>
    %218 = arith.addf %217, %212 : vector<8x8xf32>
    %c1_214 = arith.constant 1 : index
    %c2_215 = arith.constant 2 : index
    %c8_216 = arith.constant 8 : index
    %c0_217 = arith.constant 0 : index
    %219 = vector.load %arg8[%c1_214, %c2_215, %c8_216, %c0_217] : memref<2x3x64x8xf32, #tpu.memory_space<vmem>>, vector<1x1x8x8xf32>
    %220 = vector.shape_cast %219 : vector<1x1x8x8xf32> to vector<8x8xf32>
    %221 = vector.shape_cast %218 : vector<8x8xf32> to vector<1x1x8x8xf32>
    tpu.vector_store %arg8[%c1_214, %c2_215, %c8_216, %c0_217], %221 {strides = array<i32>} : memref<2x3x64x8xf32, #tpu.memory_space<vmem>>, vector<1x1x8x8xf32>,
    %222 = vector.extract_strided_slice %203 {offsets = [8, 0], sizes = [32, 8], strides = [1, 1]} : vector<48x8xf32> to vector<32x8xf32>
    %223 = vector.extract_strided_slice %206 {offsets = [0, 0], sizes = [32, 8], strides = [1, 1]} : vector<40x8xf32> to vector<32x8xf32>
    %224 = arith.addf %222, %223 : vector<32x8xf32>
    %225 = vector.extract_strided_slice %209 {offsets = [8, 0], sizes = [32, 8], strides = [1, 1]} : vector<40x8xf32> to vector<32x8xf32>
    %226 = arith.addf %224, %225 : vector<32x8xf32>
    %c1_218 = arith.constant 1 : index
    %c2_219 = arith.constant 2 : index
    %c16_220 = arith.constant 16 : index
    %c0_221 = arith.constant 0 : index
    %227 = vector.load %arg8[%c1_218, %c2_219, %c16_220, %c0_221] : memref<2x3x64x8xf32, #tpu.memory_space<vmem>>, vector<1x1x32x8xf32>
    %228 = vector.shape_cast %227 : vector<1x1x32x8xf32> to vector<32x8xf32>
    %229 = arith.addf %228, %226 : vector<32x8xf32>
    %c1_222 = arith.constant 1 : index
    %c2_223 = arith.constant 2 : index
    %c16_224 = arith.constant 16 : index
    %c0_225 = arith.constant 0 : index
    %230 = vector.load %arg8[%c1_222, %c2_223, %c16_224, %c0_225] : memref<2x3x64x8xf32, #tpu.memory_space<vmem>>, vector<1x1x32x8xf32>
    %231 = vector.shape_cast %230 : vector<1x1x32x8xf32> to vector<32x8xf32>
    %232 = vector.shape_cast %229 : vector<32x8xf32> to vector<1x1x32x8xf32>
    tpu.vector_store %arg8[%c1_222, %c2_223, %c16_224, %c0_225], %232 {strides = array<i32>} : memref<2x3x64x8xf32, #tpu.memory_space<vmem>>, vector<1x1x32x8xf32>,
    %c1_226 = arith.constant 1 : index
    %c2_227 = arith.constant 2 : index
    %c48_228 = arith.constant 48 : index
    %c0_229 = arith.constant 0 : index
    %233 = vector.load %arg8[%c1_226, %c2_227, %c48_228, %c0_229] : memref<2x3x64x8xf32, #tpu.memory_space<vmem>>, vector<1x1x8x8xf32>
    %234 = vector.shape_cast %233 : vector<1x1x8x8xf32> to vector<8x8xf32>
    %235 = arith.addf %234, %215 : vector<8x8xf32>
    %c1_230 = arith.constant 1 : index
    %c2_231 = arith.constant 2 : index
    %c48_232 = arith.constant 48 : index
    %c0_233 = arith.constant 0 : index
    %236 = vector.load %arg8[%c1_230, %c2_231, %c48_232, %c0_233] : memref<2x3x64x8xf32, #tpu.memory_space<vmem>>, vector<1x1x8x8xf32>
    %237 = vector.shape_cast %236 : vector<1x1x8x8xf32> to vector<8x8xf32>
    %238 = vector.shape_cast %235 : vector<8x8xf32> to vector<1x1x8x8xf32>
    tpu.vector_store %arg8[%c1_230, %c2_231, %c48_232, %c0_233], %238 {strides = array<i32>} : memref<2x3x64x8xf32, #tpu.memory_space<vmem>>, vector<1x1x8x8xf32>,
    %c0_i32_234 = arith.constant 0 : i32
    %239 = arith.cmpi eq, %arg2, %c0_i32_234 : i32
    %240 = arith.extui %239 : i1 to i32
    %c0_i32_235 = arith.constant 0 : i32
    %241 = arith.cmpi ne, %240, %c0_i32_235 : i32
    scf.if %241 {
      %c0_236 = arith.constant 0 : index
      %c0_237 = arith.constant 0 : index
      %242 = vector.load %arg5[%c0_236, %c0_237] : memref<1x8xf32, #tpu.memory_space<vmem>>, vector<1x8xf32>
      %c0_238 = arith.constant 0 : index
      %c0_239 = arith.constant 0 : index
      %243 = vector.load %arg6[%c0_238, %c0_239] : memref<1x8xf32, #tpu.memory_space<vmem>>, vector<1x8xf32>
      %c0_240 = arith.constant 0 : index
      %c1_241 = arith.constant 1 : index
      %c8_242 = arith.constant 8 : index
      %c0_243 = arith.constant 0 : index
      %244 = vector.load %arg8[%c0_240, %c1_241, %c8_242, %c0_243] : memref<2x3x64x8xf32, #tpu.memory_space<vmem>>, vector<1x1x48x8xf32>
      %245 = vector.shape_cast %244 : vector<1x1x48x8xf32> to vector<48x8xf32>
      %c0_244 = arith.constant 0 : index
      %c0_245 = arith.constant 0 : index
      %c7 = arith.constant 7 : index
      %c0_246 = arith.constant 0 : index
      %246 = vector.load %arg8[%c0_244, %c0_245, %c7, %c0_246] : memref<2x3x64x8xf32, #tpu.memory_space<vmem>>, vector<1x1x48x8xf32>
      %247 = vector.shape_cast %246 : vector<1x1x48x8xf32> to vector<48x8xf32>
      %c0_247 = arith.constant 0 : index
      %c2_248 = arith.constant 2 : index
      %c9 = arith.constant 9 : index
      %c0_249 = arith.constant 0 : index
      %248 = vector.load %arg8[%c0_247, %c2_248, %c9, %c0_249] : memref<2x3x64x8xf32, #tpu.memory_space<vmem>>, vector<1x1x48x8xf32>
      %249 = vector.shape_cast %248 : vector<1x1x48x8xf32> to vector<48x8xf32>
      %250 = arith.addf %245, %247 : vector<48x8xf32>
      %251 = arith.addf %250, %249 : vector<48x8xf32>
      %252 = vector.broadcast %242 : vector<1x8xf32> to vector<48x8xf32>
      %253 = arith.mulf %251, %252 : vector<48x8xf32>
      %254 = vector.broadcast %243 : vector<1x8xf32> to vector<48x8xf32>
      %255 = arith.addf %253, %254 : vector<48x8xf32>
      %c0_250 = arith.constant 0 : index
      %c0_251 = arith.constant 0 : index
      %c0_252 = arith.constant 0 : index
      %256 = vector.load %arg7[%c0_250, %c0_251, %c0_252] : memref<2x48x8xf32, #tpu.memory_space<vmem>>, vector<1x48x8xf32>
      %257 = vector.shape_cast %256 : vector<1x48x8xf32> to vector<48x8xf32>
      %258 = vector.shape_cast %255 : vector<48x8xf32> to vector<1x48x8xf32>
      tpu.vector_store %arg7[%c0_250, %c0_251, %c0_252], %258 {strides = array<i32>} : memref<2x48x8xf32, #tpu.memory_space<vmem>>, vector<1x48x8xf32>,
      %c1_253 = arith.constant 1 : index
      %c1_254 = arith.constant 1 : index
      %c8_255 = arith.constant 8 : index
      %c0_256 = arith.constant 0 : index
      %259 = vector.load %arg8[%c1_253, %c1_254, %c8_255, %c0_256] : memref<2x3x64x8xf32, #tpu.memory_space<vmem>>, vector<1x1x48x8xf32>
      %260 = vector.shape_cast %259 : vector<1x1x48x8xf32> to vector<48x8xf32>
      %c1_257 = arith.constant 1 : index
      %c0_258 = arith.constant 0 : index
      %c7_259 = arith.constant 7 : index
      %c0_260 = arith.constant 0 : index
      %261 = vector.load %arg8[%c1_257, %c0_258, %c7_259, %c0_260] : memref<2x3x64x8xf32, #tpu.memory_space<vmem>>, vector<1x1x48x8xf32>
      %262 = vector.shape_cast %261 : vector<1x1x48x8xf32> to vector<48x8xf32>
      %c1_261 = arith.constant 1 : index
      %c2_262 = arith.constant 2 : index
      %c9_263 = arith.constant 9 : index
      %c0_264 = arith.constant 0 : index
      %263 = vector.load %arg8[%c1_261, %c2_262, %c9_263, %c0_264] : memref<2x3x64x8xf32, #tpu.memory_space<vmem>>, vector<1x1x48x8xf32>
      %264 = vector.shape_cast %263 : vector<1x1x48x8xf32> to vector<48x8xf32>
      %265 = arith.addf %260, %262 : vector<48x8xf32>
      %266 = arith.addf %265, %264 : vector<48x8xf32>
      %267 = vector.broadcast %242 : vector<1x8xf32> to vector<48x8xf32>
      %268 = arith.mulf %266, %267 : vector<48x8xf32>
      %269 = vector.broadcast %243 : vector<1x8xf32> to vector<48x8xf32>
      %270 = arith.addf %268, %269 : vector<48x8xf32>
      %c1_265 = arith.constant 1 : index
      %c0_266 = arith.constant 0 : index
      %c0_267 = arith.constant 0 : index
      %271 = vector.load %arg7[%c1_265, %c0_266, %c0_267] : memref<2x48x8xf32, #tpu.memory_space<vmem>>, vector<1x48x8xf32>
      %272 = vector.shape_cast %271 : vector<1x48x8xf32> to vector<48x8xf32>
      %273 = vector.shape_cast %270 : vector<48x8xf32> to vector<1x48x8xf32>
      tpu.vector_store %arg7[%c1_265, %c0_266, %c0_267], %273 {strides = array<i32>} : memref<2x48x8xf32, #tpu.memory_space<vmem>>, vector<1x48x8xf32>,
    } else {
    }
    return
  }
  func.func @transform_0(%arg0: i32, %arg1: i32, %arg2: i32) -> (i32, i32, i32) {
    %c0_i32 = arith.constant 0 : i32
    %c0_i32_0 = arith.constant 0 : i32
    return %arg0, %c0_i32, %arg2 : i32, i32, i32
  }
  func.func @transform_1(%arg0: i32, %arg1: i32, %arg2: i32) -> (i32, i32, i32, i32) {
    %c0_i32 = arith.constant 0 : i32
    %c0_i32_0 = arith.constant 0 : i32
    %c0_i32_1 = arith.constant 0 : i32
    return %c0_i32, %c0_i32_0, %arg2, %arg1 : i32, i32, i32, i32
  }
  func.func @transform_2(%arg0: i32, %arg1: i32, %arg2: i32) -> (i32, i32) {
    %c0_i32 = arith.constant 0 : i32
    %c0_i32_0 = arith.constant 0 : i32
    return %c0_i32, %arg1 : i32, i32
  }
  func.func @transform_3(%arg0: i32, %arg1: i32, %arg2: i32) -> (i32, i32) {
    %c0_i32 = arith.constant 0 : i32
    %c0_i32_0 = arith.constant 0 : i32
    return %c0_i32, %arg1 : i32, i32
  }
  func.func @transform_4(%arg0: i32, %arg1: i32, %arg2: i32) -> (i32, i32, i32) {
    %c0_i32 = arith.constant 0 : i32
    %c0_i32_0 = arith.constant 0 : i32
    return %arg0, %c0_i32, %arg1 : i32, i32, i32
  }
}

</mosaic_0001>

<llo_original>
// kernel: tpu_custom_call.1
$region0: #{tpu_custom_call.1}
  #allocation0 [shape = 'u32[]', space=smem, size = 0x4, offset = 0x4, fixed_abs, tag = 'smem constant byte address 0x4 - core index']
  #allocation1 [shape = 'u32[72,128]{1,0:T(1,128)}', space=vmem, size = 0x9000, scoped, tag = 'internal scratch']
  #allocation2 [shape = 'f32[2,3,64,8]{3,2,1,0:T(8,128)}', space=vmem, size = 0x30000, scoped, tag = 'scratch operand']
  %s0 = inlined_call_operand.vmem [shape: f32[2,48,8], index: 0, kind: input, shape index: {}]
  %s1 = inlined_call_operand.vmem [shape: f32[3,3,8,8], index: 1, kind: input, shape index: {}]
  %s2 = inlined_call_operand.vmem [shape: f32[1,8], index: 2, kind: input, shape index: {}]
  %s3 = inlined_call_operand.vmem [shape: f32[1,8], index: 3, kind: input, shape index: {}]
  %s4 = inlined_call_operand.vmem [shape: f32[2,48,8], index: 4, kind: output, shape index: {}]
  %s5 = sld [smem:[#allocation0]]
  $region34: #{tpu_custom_call.1} parent=0
    _
  %s7 = ssub.s32 1, %s5
  %s8 = scalar_select 0, %s7, %s5
  // Predicated region
  $region2: #{tpu_custom_call.1} parent=0 // pred_check
    _
  $region3: #{tpu_custom_call.1} parent=0 // pred_check_branch
    %10 = sbr.rel (0) target = $region5
  $region4: #{tpu_custom_call.1} parent=0 // pred_region
    _
  $region5: #{tpu_custom_call.1} parent=0 // pred_fallthru
    _
  // Predicated region
  $region6: #{tpu_custom_call.1} parent=0 // pred_check
    _
  $region7: #{tpu_custom_call.1} parent=0 // pred_check_branch
    %12 = sbr.rel (0) target = $region9
  $region8: #{tpu_custom_call.1} parent=0 // pred_region
    _
  $region9: #{tpu_custom_call.1} parent=0 // pred_fallthru
    _
  // Predicated region
  $region10: #{tpu_custom_call.1} parent=0 // pred_check
    _
  $region11: #{tpu_custom_call.1} parent=0 // pred_check_branch
    %14 = sbr.rel (0) target = $region13
  $region12: #{tpu_custom_call.1} parent=0 // pred_region
    _
  $region13: #{tpu_custom_call.1} parent=0 // pred_fallthru
    _
  // Predicated region
  $region14: #{tpu_custom_call.1} parent=0 // pred_check
    _
  $region15: #{tpu_custom_call.1} parent=0 // pred_check_branch
    %16 = sbr.rel (0) target = $region17
  $region16: #{tpu_custom_call.1} parent=0 // pred_region
    _
  $region17: #{tpu_custom_call.1} parent=0 // pred_fallthru
    _
  %p17 = scmp.eq.s32.totalorder 0, 0
  // Predicated region
  $region18: #{tpu_custom_call.1} parent=0 // pred_check
    %p18 = pneg %p17
  $region19: #{tpu_custom_call.1} parent=0 // pred_check_branch
    %20 = sbr.rel (%p18) target = $region21
  $region20: #{tpu_custom_call.1} parent=0 // pred_region
    %vm21 = vcmask 64512
    %22 = vst.msk [vmem:[#allocation2] sm:$0xff] %vm21, 0.0
    %23 = vst.msk [vmem:[#allocation2 + $0x8] sm:$0xff] %vm21, 0.0
    %24 = vst.msk [vmem:[#allocation2 + $0x10] sm:$0xff] %vm21, 0.0
    %25 = vst.msk [vmem:[#allocation2 + $0x18] sm:$0xff] %vm21, 0.0
    %26 = vst.msk [vmem:[#allocation2 + $0x20] sm:$0xff] %vm21, 0.0
    %27 = vst.msk [vmem:[#allocation2 + $0x28] sm:$0xff] %vm21, 0.0
    %28 = vst.msk [vmem:[#allocation2 + $0x30] sm:$0xff] %vm21, 0.0
    %29 = vst.msk [vmem:[#allocation2 + $0x38] sm:$0xff] %vm21, 0.0
    %30 = vst.msk [vmem:[#allocation2 + $0x40] sm:$0xff] %vm21, 0.0
    %31 = vst.msk [vmem:[#allocation2 + $0x48] sm:$0xff] %vm21, 0.0
    %32 = vst.msk [vmem:[#allocation2 + $0x50] sm:$0xff] %vm21, 0.0
    %33 = vst.msk [vmem:[#allocation2 + $0x58] sm:$0xff] %vm21, 0.0
    %34 = vst.msk [vmem:[#allocation2 + $0x60] sm:$0xff] %vm21, 0.0
    %35 = vst.msk [vmem:[#allocation2 + $0x68] sm:$0xff] %vm21, 0.0
    %36 = vst.msk [vmem:[#allocation2 + $0x70] sm:$0xff] %vm21, 0.0
    %37 = vst.msk [vmem:[#allocation2 + $0x78] sm:$0xff] %vm21, 0.0
    %38 = vst.msk [vmem:[#allocation2 + $0x80] sm:$0xff] %vm21, 0.0
    %39 = vst.msk [vmem:[#allocation2 + $0x88] sm:$0xff] %vm21, 0.0
    %40 = vst.msk [vmem:[#allocation2 + $0x90] sm:$0xff] %vm21, 0.0
    %41 = vst.msk [vmem:[#allocation2 + $0x98] sm:$0xff] %vm21, 0.0
    %42 = vst.msk [vmem:[#allocation2 + $0xa0] sm:$0xff] %vm21, 0.0
    %43 = vst.msk [vmem:[#allocation2 + $0xa8] sm:$0xff] %vm21, 0.0
    %44 = vst.msk [vmem:[#allocation2 + $0xb0] sm:$0xff] %vm21, 0.0
    %45 = vst.msk [vmem:[#allocation2 + $0xb8] sm:$0xff] %vm21, 0.0
    %46 = vst.msk [vmem:[#allocation2 + $0xc0] sm:$0xff] %vm21, 0.0
    %47 = vst.msk [vmem:[#allocation2 + $0xc8] sm:$0xff] %vm21, 0.0
    %48 = vst.msk [vmem:[#allocation2 + $0xd0] sm:$0xff] %vm21, 0.0
    %49 = vst.msk [vmem:[#allocation2 + $0xd8] sm:$0xff] %vm21, 0.0
    %50 = vst.msk [vmem:[#allocation2 + $0xe0] sm:$0xff] %vm21, 0.0
    %51 = vst.msk [vmem:[#allocation2 + $0xe8] sm:$0xff] %vm21, 0.0
    %52 = vst.msk [vmem:[#allocation2 + $0xf0] sm:$0xff] %vm21, 0.0
    %53 = vst.msk [vmem:[#allocation2 + $0xf8] sm:$0xff] %vm21, 0.0
    %54 = vst.msk [vmem:[#allocation2 + $0x100] sm:$0xff] %vm21, 0.0
    %55 = vst.msk [vmem:[#allocation2 + $0x108] sm:$0xff] %vm21, 0.0
    %56 = vst.msk [vmem:[#allocation2 + $0x110] sm:$0xff] %vm21, 0.0
    %57 = vst.msk [vmem:[#allocation2 + $0x118] sm:$0xff] %vm21, 0.0
    %58 = vst.msk [vmem:[#allocation2 + $0x120] sm:$0xff] %vm21, 0.0
    %59 = vst.msk [vmem:[#allocation2 + $0x128] sm:$0xff] %vm21, 0.0
    %60 = vst.msk [vmem:[#allocation2 + $0x130] sm:$0xff] %vm21, 0.0
    %61 = vst.msk [vmem:[#allocation2 + $0x138] sm:$0xff] %vm21, 0.0
    %62 = vst.msk [vmem:[#allocation2 + $0x140] sm:$0xff] %vm21, 0.0
    %63 = vst.msk [vmem:[#allocation2 + $0x148] sm:$0xff] %vm21, 0.0
    %64 = vst.msk [vmem:[#allocation2 + $0x150] sm:$0xff] %vm21, 0.0
    %65 = vst.msk [vmem:[#allocation2 + $0x158] sm:$0xff] %vm21, 0.0
    %66 = vst.msk [vmem:[#allocation2 + $0x160] sm:$0xff] %vm21, 0.0
    %67 = vst.msk [vmem:[#allocation2 + $0x168] sm:$0xff] %vm21, 0.0
    %68 = vst.msk [vmem:[#allocation2 + $0x170] sm:$0xff] %vm21, 0.0
    %69 = vst.msk [vmem:[#allocation2 + $0x178] sm:$0xff] %vm21, 0.0
  $region21: #{tpu_custom_call.1} parent=0 // pred_fallthru
    _
  %v70 = vld [vmem:[%s0] sm:$0xff]
  %v71 = vld [vmem:[%s0 + $0x8] sm:$0xff]
  %v72 = vld [vmem:[%s0 + $0x10] sm:$0xff]
  %v73 = vld [vmem:[%s0 + $0x18] sm:$0xff]
  %v74 = vld [vmem:[%s0 + $0x20] sm:$0xff]
  %v75 = vld [vmem:[%s0 + $0x28] sm:$0xff]
  %s76 = scalar_lea.vmem %s1, 24
  %v77 = vld [vmem:[%s76] sm:$0xff]
  %vm78 = vcmask 64512
  %v80 = vsel %vm78, %v70, 0
  %v83 = vsel %vm78, %v71, 0
  %v86 = vsel %vm78, %v72, 0
  %v89 = vsel %vm78, %v73, 0
  %v92 = vsel %vm78, %v74, 0
  %v95 = vsel %vm78, %v75, 0
  %97 = vmatpush.msra.mxu0 0.0
  %98 = vmatpush.msra.mxu0 0.0
  %99 = vmatpush.msra.mxu0 0.0
  %100 = vmatpush.msra.mxu0 0.0
  %101 = vmatpush.msra.mxu0 0.0
  %102 = vmatpush.msra.mxu0 0.0
  %103 = vmatpush.msra.mxu0 0.0
  %104 = vmatpush.msra.mxu0 0.0
  %105 = vmatpush.msra.mxu0 0.0
  %106 = vmatpush.msra.mxu0 0.0
  %107 = vmatpush.msra.mxu0 0.0
  %108 = vmatpush.msra.mxu0 0.0
  %109 = vmatpush.msra.mxu0 0.0
  %110 = vmatpush.msra.mxu0 0.0
  %111 = vmatpush.msra.mxu0 0.0
  %112 = vmatpush.msra.mxu0 %v77
  %113 = vmatmul.f32.gmra.mxu0 %v80
  %v114 = vpop.f32.mrf.mxu0
  %v115 = vadd.f32 0.0, %v114
  %116 = vmatmul.f32.gmra.mxu0 %v83
  %v117 = vpop.f32.mrf.mxu0
  %v118 = vadd.f32 0.0, %v117
  %119 = vmatmul.f32.gmra.mxu0 %v86
  %v120 = vpop.f32.mrf.mxu0
  %v121 = vadd.f32 0.0, %v120
  %122 = vmatmul.f32.gmra.mxu0 %v89
  %v123 = vpop.f32.mrf.mxu0
  %v124 = vadd.f32 0.0, %v123
  %125 = vmatmul.f32.gmra.mxu0 %v92
  %v126 = vpop.f32.mrf.mxu0
  %v127 = vadd.f32 0.0, %v126
  %128 = vmatmul.f32.gmra.mxu0 %v95
  %v129 = vpop.f32.mrf.mxu0
  %v130 = vadd.f32 0.0, %v129
  %131 = vdwg.mxu0
  %v132 = vld [vmem:[%s1] sm:$0xff]
  %133 = vmatpush.msra.mxu0 0.0
  %134 = vmatpush.msra.mxu0 0.0
  %135 = vmatpush.msra.mxu0 0.0
  %136 = vmatpush.msra.mxu0 0.0
  %137 = vmatpush.msra.mxu0 0.0
  %138 = vmatpush.msra.mxu0 0.0
  %139 = vmatpush.msra.mxu0 0.0
  %140 = vmatpush.msra.mxu0 0.0
  %141 = vmatpush.msra.mxu0 0.0
  %142 = vmatpush.msra.mxu0 0.0
  %143 = vmatpush.msra.mxu0 0.0
  %144 = vmatpush.msra.mxu0 0.0
  %145 = vmatpush.msra.mxu0 0.0
  %146 = vmatpush.msra.mxu0 0.0
  %147 = vmatpush.msra.mxu0 0.0
  %148 = vmatpush.msra.mxu0 %v132
  %149 = vmatmul.f32.gmra.mxu0 %v80
  %v150 = vpop.f32.mrf.mxu0
  %v151 = vadd.f32 0.0, %v150
  %152 = vmatmul.f32.gmra.mxu0 %v83
  %v153 = vpop.f32.mrf.mxu0
  %v154 = vadd.f32 0.0, %v153
  %155 = vmatmul.f32.gmra.mxu0 %v86
  %v156 = vpop.f32.mrf.mxu0
  %v157 = vadd.f32 0.0, %v156
  %158 = vmatmul.f32.gmra.mxu0 %v89
  %v159 = vpop.f32.mrf.mxu0
  %v160 = vadd.f32 0.0, %v159
  %161 = vmatmul.f32.gmra.mxu0 %v92
  %v162 = vpop.f32.mrf.mxu0
  %v163 = vadd.f32 0.0, %v162
  %164 = vdwg.mxu0
  %s165 = scalar_lea.vmem %s1, 48
  %v166 = vld [vmem:[%s165] sm:$0xff]
  %167 = vmatpush.msra.mxu0 0.0
  %168 = vmatpush.msra.mxu0 0.0
  %169 = vmatpush.msra.mxu0 0.0
  %170 = vmatpush.msra.mxu0 0.0
  %171 = vmatpush.msra.mxu0 0.0
  %172 = vmatpush.msra.mxu0 0.0
  %173 = vmatpush.msra.mxu0 0.0
  %174 = vmatpush.msra.mxu0 0.0
  %175 = vmatpush.msra.mxu0 0.0
  %176 = vmatpush.msra.mxu0 0.0
  %177 = vmatpush.msra.mxu0 0.0
  %178 = vmatpush.msra.mxu0 0.0
  %179 = vmatpush.msra.mxu0 0.0
  %180 = vmatpush.msra.mxu0 0.0
  %181 = vmatpush.msra.mxu0 0.0
  %182 = vmatpush.msra.mxu0 %v166
  %183 = vmatmul.f32.gmra.mxu0 %v83
  %v184 = vpop.f32.mrf.mxu0
  %v185 = vadd.f32 0.0, %v184
  %186 = vmatmul.f32.gmra.mxu0 %v86
  %v187 = vpop.f32.mrf.mxu0
  %v188 = vadd.f32 0.0, %v187
  %189 = vmatmul.f32.gmra.mxu0 %v89
  %v190 = vpop.f32.mrf.mxu0
  %v191 = vadd.f32 0.0, %v190
  %192 = vmatmul.f32.gmra.mxu0 %v92
  %v193 = vpop.f32.mrf.mxu0
  %v194 = vadd.f32 0.0, %v193
  %195 = vmatmul.f32.gmra.mxu0 %v95
  %v196 = vpop.f32.mrf.mxu0
  %v197 = vadd.f32 0.0, %v196
  %198 = vdwg.mxu0
  %v199 = vadd.f32 %v115, %v185
  %v200 = vadd.f32 %v130, %v163
  %v201 = vld [vmem:[#allocation2 + $0x8] sm:$0xff]
  %v202 = vadd.f32 %v201, %v199
  %203 = vst.msk [vmem:[#allocation2 + $0x8] sm:$0xff] %vm78, %v202
  %v204 = vadd.f32 %v118, %v151
  %v205 = vadd.f32 %v121, %v154
  %v206 = vadd.f32 %v124, %v157
  %v207 = vadd.f32 %v127, %v160
  %v208 = vadd.f32 %v204, %v188
  %v209 = vadd.f32 %v205, %v191
  %v210 = vadd.f32 %v206, %v194
  %v211 = vadd.f32 %v207, %v197
  %v212 = vld [vmem:[#allocation2 + $0x10] sm:$0xff]
  %v213 = vld [vmem:[#allocation2 + $0x18] sm:$0xff]
  %v214 = vld [vmem:[#allocation2 + $0x20] sm:$0xff]
  %v215 = vld [vmem:[#allocation2 + $0x28] sm:$0xff]
  %v216 = vadd.f32 %v212, %v208
  %v217 = vadd.f32 %v213, %v209
  %v218 = vadd.f32 %v214, %v210
  %v219 = vadd.f32 %v215, %v211
  %220 = vst.msk [vmem:[#allocation2 + $0x10] sm:$0xff] %vm78, %v216
  %221 = vst.msk [vmem:[#allocation2 + $0x18] sm:$0xff] %vm78, %v217
  %222 = vst.msk [vmem:[#allocation2 + $0x20] sm:$0xff] %vm78, %v218
  %223 = vst.msk [vmem:[#allocation2 + $0x28] sm:$0xff] %vm78, %v219
  %v224 = vld [vmem:[#allocation2 + $0x30] sm:$0xff]
  %v225 = vadd.f32 %v224, %v200
  %226 = vst.msk [vmem:[#allocation2 + $0x30] sm:$0xff] %vm78, %v225
  %s227 = scalar_lea.vmem %s1, 32
  %v228 = vld [vmem:[%s227] sm:$0xff]
  %229 = vmatpush.msra.mxu0 0.0
  %230 = vmatpush.msra.mxu0 0.0
  %231 = vmatpush.msra.mxu0 0.0
  %232 = vmatpush.msra.mxu0 0.0
  %233 = vmatpush.msra.mxu0 0.0
  %234 = vmatpush.msra.mxu0 0.0
  %235 = vmatpush.msra.mxu0 0.0
  %236 = vmatpush.msra.mxu0 0.0
  %237 = vmatpush.msra.mxu0 0.0
  %238 = vmatpush.msra.mxu0 0.0
  %239 = vmatpush.msra.mxu0 0.0
  %240 = vmatpush.msra.mxu0 0.0
  %241 = vmatpush.msra.mxu0 0.0
  %242 = vmatpush.msra.mxu0 0.0
  %243 = vmatpush.msra.mxu0 0.0
  %244 = vmatpush.msra.mxu0 %v228
  %245 = vmatmul.f32.gmra.mxu0 %v80
  %v246 = vpop.f32.mrf.mxu0
  %v247 = vadd.f32 0.0, %v246
  %248 = vmatmul.f32.gmra.mxu0 %v83
  %v249 = vpop.f32.mrf.mxu0
  %v250 = vadd.f32 0.0, %v249
  %251 = vmatmul.f32.gmra.mxu0 %v86
  %v252 = vpop.f32.mrf.mxu0
  %v253 = vadd.f32 0.0, %v252
  %254 = vmatmul.f32.gmra.mxu0 %v89
  %v255 = vpop.f32.mrf.mxu0
  %v256 = vadd.f32 0.0, %v255
  %257 = vmatmul.f32.gmra.mxu0 %v92
  %v258 = vpop.f32.mrf.mxu0
  %v259 = vadd.f32 0.0, %v258
  %260 = vmatmul.f32.gmra.mxu0 %v95
  %v261 = vpop.f32.mrf.mxu0
  %v262 = vadd.f32 0.0, %v261
  %263 = vdwg.mxu0
  %s264 = scalar_lea.vmem %s1, 8
  %v265 = vld [vmem:[%s264] sm:$0xff]
  %266 = vmatpush.msra.mxu0 0.0
  %267 = vmatpush.msra.mxu0 0.0
  %268 = vmatpush.msra.mxu0 0.0
  %269 = vmatpush.msra.mxu0 0.0
  %270 = vmatpush.msra.mxu0 0.0
  %271 = vmatpush.msra.mxu0 0.0
  %272 = vmatpush.msra.mxu0 0.0
  %273 = vmatpush.msra.mxu0 0.0
  %274 = vmatpush.msra.mxu0 0.0
  %275 = vmatpush.msra.mxu0 0.0
  %276 = vmatpush.msra.mxu0 0.0
  %277 = vmatpush.msra.mxu0 0.0
  %278 = vmatpush.msra.mxu0 0.0
  %279 = vmatpush.msra.mxu0 0.0
  %280 = vmatpush.msra.mxu0 0.0
  %281 = vmatpush.msra.mxu0 %v265
  %282 = vmatmul.f32.gmra.mxu0 %v80
  %v283 = vpop.f32.mrf.mxu0
  %v284 = vadd.f32 0.0, %v283
  %285 = vmatmul.f32.gmra.mxu0 %v83
  %v286 = vpop.f32.mrf.mxu0
  %v287 = vadd.f32 0.0, %v286
  %288 = vmatmul.f32.gmra.mxu0 %v86
  %v289 = vpop.f32.mrf.mxu0
  %v290 = vadd.f32 0.0, %v289
  %291 = vmatmul.f32.gmra.mxu0 %v89
  %v292 = vpop.f32.mrf.mxu0
  %v293 = vadd.f32 0.0, %v292
  %294 = vmatmul.f32.gmra.mxu0 %v92
  %v295 = vpop.f32.mrf.mxu0
  %v296 = vadd.f32 0.0, %v295
  %297 = vdwg.mxu0
  %s298 = scalar_lea.vmem %s1, 56
  %v299 = vld [vmem:[%s298] sm:$0xff]
  %300 = vmatpush.msra.mxu0 0.0
  %301 = vmatpush.msra.mxu0 0.0
  %302 = vmatpush.msra.mxu0 0.0
  %303 = vmatpush.msra.mxu0 0.0
  %304 = vmatpush.msra.mxu0 0.0
  %305 = vmatpush.msra.mxu0 0.0
  %306 = vmatpush.msra.mxu0 0.0
  %307 = vmatpush.msra.mxu0 0.0
  %308 = vmatpush.msra.mxu0 0.0
  %309 = vmatpush.msra.mxu0 0.0
  %310 = vmatpush.msra.mxu0 0.0
  %311 = vmatpush.msra.mxu0 0.0
  %312 = vmatpush.msra.mxu0 0.0
  %313 = vmatpush.msra.mxu0 0.0
  %314 = vmatpush.msra.mxu0 0.0
  %315 = vmatpush.msra.mxu0 %v299
  %316 = vmatmul.f32.gmra.mxu0 %v83
  %v317 = vpop.f32.mrf.mxu0
  %v318 = vadd.f32 0.0, %v317
  %319 = vmatmul.f32.gmra.mxu0 %v86
  %v320 = vpop.f32.mrf.mxu0
  %v321 = vadd.f32 0.0, %v320
  %322 = vmatmul.f32.gmra.mxu0 %v89
  %v323 = vpop.f32.mrf.mxu0
  %v324 = vadd.f32 0.0, %v323
  %325 = vmatmul.f32.gmra.mxu0 %v92
  %v326 = vpop.f32.mrf.mxu0
  %v327 = vadd.f32 0.0, %v326
  %328 = vmatmul.f32.gmra.mxu0 %v95
  %v329 = vpop.f32.mrf.mxu0
  %v330 = vadd.f32 0.0, %v329
  %331 = vdwg.mxu0
  %v332 = vadd.f32 %v247, %v318
  %v333 = vadd.f32 %v262, %v296
  %s334 = scalar_lea.vmem [#allocation2], 64
  %v335 = vld [vmem:[%s334 + $0x8] sm:$0xff]
  %v336 = vadd.f32 %v335, %v332
  %337 = vst.msk [vmem:[%s334 + $0x8] sm:$0xff] %vm78, %v336
  %v338 = vadd.f32 %v250, %v284
  %v339 = vadd.f32 %v253, %v287
  %v340 = vadd.f32 %v256, %v290
  %v341 = vadd.f32 %v259, %v293
  %v342 = vadd.f32 %v338, %v321
  %v343 = vadd.f32 %v339, %v324
  %v344 = vadd.f32 %v340, %v327
  %v345 = vadd.f32 %v341, %v330
  %v346 = vld [vmem:[%s334 + $0x10] sm:$0xff]
  %v347 = vld [vmem:[%s334 + $0x18] sm:$0xff]
  %v348 = vld [vmem:[%s334 + $0x20] sm:$0xff]
  %v349 = vld [vmem:[%s334 + $0x28] sm:$0xff]
  %v350 = vadd.f32 %v346, %v342
  %v351 = vadd.f32 %v347, %v343
  %v352 = vadd.f32 %v348, %v344
  %v353 = vadd.f32 %v349, %v345
  %354 = vst.msk [vmem:[%s334 + $0x10] sm:$0xff] %vm78, %v350
  %355 = vst.msk [vmem:[%s334 + $0x18] sm:$0xff] %vm78, %v351
  %356 = vst.msk [vmem:[%s334 + $0x20] sm:$0xff] %vm78, %v352
  %357 = vst.msk [vmem:[%s334 + $0x28] sm:$0xff] %vm78, %v353
  %v358 = vld [vmem:[%s334 + $0x30] sm:$0xff]
  %v359 = vadd.f32 %v358, %v333
  %360 = vst.msk [vmem:[%s334 + $0x30] sm:$0xff] %vm78, %v359
  %s361 = scalar_lea.vmem %s1, 40
  %v362 = vld [vmem:[%s361] sm:$0xff]
  %363 = vmatpush.msra.mxu0 0.0
  %364 = vmatpush.msra.mxu0 0.0
  %365 = vmatpush.msra.mxu0 0.0
  %366 = vmatpush.msra.mxu0 0.0
  %367 = vmatpush.msra.mxu0 0.0
  %368 = vmatpush.msra.mxu0 0.0
  %369 = vmatpush.msra.mxu0 0.0
  %370 = vmatpush.msra.mxu0 0.0
  %371 = vmatpush.msra.mxu0 0.0
  %372 = vmatpush.msra.mxu0 0.0
  %373 = vmatpush.msra.mxu0 0.0
  %374 = vmatpush.msra.mxu0 0.0
  %375 = vmatpush.msra.mxu0 0.0
  %376 = vmatpush.msra.mxu0 0.0
  %377 = vmatpush.msra.mxu0 0.0
  %378 = vmatpush.msra.mxu0 %v362
  %379 = vmatmul.f32.gmra.mxu0 %v80
  %v380 = vpop.f32.mrf.mxu0
  %v381 = vadd.f32 0.0, %v380
  %382 = vmatmul.f32.gmra.mxu0 %v83
  %v383 = vpop.f32.mrf.mxu0
  %v384 = vadd.f32 0.0, %v383
  %385 = vmatmul.f32.gmra.mxu0 %v86
  %v386 = vpop.f32.mrf.mxu0
  %v387 = vadd.f32 0.0, %v386
  %388 = vmatmul.f32.gmra.mxu0 %v89
  %v389 = vpop.f32.mrf.mxu0
  %v390 = vadd.f32 0.0, %v389
  %391 = vmatmul.f32.gmra.mxu0 %v92
  %v392 = vpop.f32.mrf.mxu0
  %v393 = vadd.f32 0.0, %v392
  %394 = vmatmul.f32.gmra.mxu0 %v95
  %v395 = vpop.f32.mrf.mxu0
  %v396 = vadd.f32 0.0, %v395
  %397 = vdwg.mxu0
  %s398 = scalar_lea.vmem %s1, 16
  %v399 = vld [vmem:[%s398] sm:$0xff]
  %400 = vmatpush.msra.mxu0 0.0
  %401 = vmatpush.msra.mxu0 0.0
  %402 = vmatpush.msra.mxu0 0.0
  %403 = vmatpush.msra.mxu0 0.0
  %404 = vmatpush.msra.mxu0 0.0
  %405 = vmatpush.msra.mxu0 0.0
  %406 = vmatpush.msra.mxu0 0.0
  %407 = vmatpush.msra.mxu0 0.0
  %408 = vmatpush.msra.mxu0 0.0
  %409 = vmatpush.msra.mxu0 0.0
  %410 = vmatpush.msra.mxu0 0.0
  %411 = vmatpush.msra.mxu0 0.0
  %412 = vmatpush.msra.mxu0 0.0
  %413 = vmatpush.msra.mxu0 0.0
  %414 = vmatpush.msra.mxu0 0.0
  %415 = vmatpush.msra.mxu0 %v399
  %416 = vmatmul.f32.gmra.mxu0 %v80
  %v417 = vpop.f32.mrf.mxu0
  %v418 = vadd.f32 0.0, %v417
  %419 = vmatmul.f32.gmra.mxu0 %v83
  %v420 = vpop.f32.mrf.mxu0
  %v421 = vadd.f32 0.0, %v420
  %422 = vmatmul.f32.gmra.mxu0 %v86
  %v423 = vpop.f32.mrf.mxu0
  %v424 = vadd.f32 0.0, %v423
  %425 = vmatmul.f32.gmra.mxu0 %v89
  %v426 = vpop.f32.mrf.mxu0
  %v427 = vadd.f32 0.0, %v426
  %428 = vmatmul.f32.gmra.mxu0 %v92
  %v429 = vpop.f32.mrf.mxu0
  %v430 = vadd.f32 0.0, %v429
  %431 = vdwg.mxu0
  %s432 = scalar_lea.vmem %s1, 64
  %v433 = vld [vmem:[%s432] sm:$0xff]
  %434 = vmatpush.msra.mxu0 0.0
  %435 = vmatpush.msra.mxu0 0.0
  %436 = vmatpush.msra.mxu0 0.0
  %437 = vmatpush.msra.mxu0 0.0
  %438 = vmatpush.msra.mxu0 0.0
  %439 = vmatpush.msra.mxu0 0.0
  %440 = vmatpush.msra.mxu0 0.0
  %441 = vmatpush.msra.mxu0 0.0
  %442 = vmatpush.msra.mxu0 0.0
  %443 = vmatpush.msra.mxu0 0.0
  %444 = vmatpush.msra.mxu0 0.0
  %445 = vmatpush.msra.mxu0 0.0
  %446 = vmatpush.msra.mxu0 0.0
  %447 = vmatpush.msra.mxu0 0.0
  %448 = vmatpush.msra.mxu0 0.0
  %449 = vmatpush.msra.mxu0 %v433
  %450 = vmatmul.f32.gmra.mxu0 %v83
  %v451 = vpop.f32.mrf.mxu0
  %v452 = vadd.f32 0.0, %v451
  %453 = vmatmul.f32.gmra.mxu0 %v86
  %v454 = vpop.f32.mrf.mxu0
  %v455 = vadd.f32 0.0, %v454
  %456 = vmatmul.f32.gmra.mxu0 %v89
  %v457 = vpop.f32.mrf.mxu0
  %v458 = vadd.f32 0.0, %v457
  %459 = vmatmul.f32.gmra.mxu0 %v92
  %v460 = vpop.f32.mrf.mxu0
  %v461 = vadd.f32 0.0, %v460
  %462 = vmatmul.f32.gmra.mxu0 %v95
  %v463 = vpop.f32.mrf.mxu0
  %v464 = vadd.f32 0.0, %v463
  %465 = vdwg.mxu0
  %v466 = vadd.f32 %v381, %v452
  %v467 = vadd.f32 %v396, %v430
  %s468 = scalar_lea.vmem [#allocation2], 128
  %v469 = vld [vmem:[%s468 + $0x8] sm:$0xff]
  %v470 = vadd.f32 %v469, %v466
  %471 = vst.msk [vmem:[%s468 + $0x8] sm:$0xff] %vm78, %v470
  %v472 = vadd.f32 %v384, %v418
  %v473 = vadd.f32 %v387, %v421
  %v474 = vadd.f32 %v390, %v424
  %v475 = vadd.f32 %v393, %v427
  %v476 = vadd.f32 %v472, %v455
  %v477 = vadd.f32 %v473, %v458
  %v478 = vadd.f32 %v474, %v461
  %v479 = vadd.f32 %v475, %v464
  %v480 = vld [vmem:[%s468 + $0x10] sm:$0xff]
  %v481 = vld [vmem:[%s468 + $0x18] sm:$0xff]
  %v482 = vld [vmem:[%s468 + $0x20] sm:$0xff]
  %v483 = vld [vmem:[%s468 + $0x28] sm:$0xff]
  %v484 = vadd.f32 %v480, %v476
  %v485 = vadd.f32 %v481, %v477
  %v486 = vadd.f32 %v482, %v478
  %v487 = vadd.f32 %v483, %v479
  %488 = vst.msk [vmem:[%s468 + $0x10] sm:$0xff] %vm78, %v484
  %489 = vst.msk [vmem:[%s468 + $0x18] sm:$0xff] %vm78, %v485
  %490 = vst.msk [vmem:[%s468 + $0x20] sm:$0xff] %vm78, %v486
  %491 = vst.msk [vmem:[%s468 + $0x28] sm:$0xff] %vm78, %v487
  %v492 = vld [vmem:[%s468 + $0x30] sm:$0xff]
  %v493 = vadd.f32 %v492, %v467
  %494 = vst.msk [vmem:[%s468 + $0x30] sm:$0xff] %vm78, %v493
  %s495 = scalar_lea.vmem %s0, 48
  %v496 = vld [vmem:[%s495] sm:$0xff]
  %v497 = vld [vmem:[%s495 + $0x8] sm:$0xff]
  %v498 = vld [vmem:[%s495 + $0x10] sm:$0xff]
  %v499 = vld [vmem:[%s495 + $0x18] sm:$0xff]
  %v500 = vld [vmem:[%s495 + $0x20] sm:$0xff]
  %v501 = vld [vmem:[%s495 + $0x28] sm:$0xff]
  %v502 = vld [vmem:[%s76] sm:$0xff]
  %v504 = vsel %vm78, %v496, 0
  %v507 = vsel %vm78, %v497, 0
  %v510 = vsel %vm78, %v498, 0
  %v513 = vsel %vm78, %v499, 0
  %v516 = vsel %vm78, %v500, 0
  %v519 = vsel %vm78, %v501, 0
  %521 = vmatpush.msra.mxu0 0.0
  %522 = vmatpush.msra.mxu0 0.0
  %523 = vmatpush.msra.mxu0 0.0
  %524 = vmatpush.msra.mxu0 0.0
  %525 = vmatpush.msra.mxu0 0.0
  %526 = vmatpush.msra.mxu0 0.0
  %527 = vmatpush.msra.mxu0 0.0
  %528 = vmatpush.msra.mxu0 0.0
  %529 = vmatpush.msra.mxu0 0.0
  %530 = vmatpush.msra.mxu0 0.0
  %531 = vmatpush.msra.mxu0 0.0
  %532 = vmatpush.msra.mxu0 0.0
  %533 = vmatpush.msra.mxu0 0.0
  %534 = vmatpush.msra.mxu0 0.0
  %535 = vmatpush.msra.mxu0 0.0
  %536 = vmatpush.msra.mxu0 %v502
  %537 = vmatmul.f32.gmra.mxu0 %v504
  %v538 = vpop.f32.mrf.mxu0
  %v539 = vadd.f32 0.0, %v538
  %540 = vmatmul.f32.gmra.mxu0 %v507
  %v541 = vpop.f32.mrf.mxu0
  %v542 = vadd.f32 0.0, %v541
  %543 = vmatmul.f32.gmra.mxu0 %v510
  %v544 = vpop.f32.mrf.mxu0
  %v545 = vadd.f32 0.0, %v544
  %546 = vmatmul.f32.gmra.mxu0 %v513
  %v547 = vpop.f32.mrf.mxu0
  %v548 = vadd.f32 0.0, %v547
  %549 = vmatmul.f32.gmra.mxu0 %v516
  %v550 = vpop.f32.mrf.mxu0
  %v551 = vadd.f32 0.0, %v550
  %552 = vmatmul.f32.gmra.mxu0 %v519
  %v553 = vpop.f32.mrf.mxu0
  %v554 = vadd.f32 0.0, %v553
  %555 = vdwg.mxu0
  %v556 = vld [vmem:[%s1] sm:$0xff]
  %557 = vmatpush.msra.mxu0 0.0
  %558 = vmatpush.msra.mxu0 0.0
  %559 = vmatpush.msra.mxu0 0.0
  %560 = vmatpush.msra.mxu0 0.0
  %561 = vmatpush.msra.mxu0 0.0
  %562 = vmatpush.msra.mxu0 0.0
  %563 = vmatpush.msra.mxu0 0.0
  %564 = vmatpush.msra.mxu0 0.0
  %565 = vmatpush.msra.mxu0 0.0
  %566 = vmatpush.msra.mxu0 0.0
  %567 = vmatpush.msra.mxu0 0.0
  %568 = vmatpush.msra.mxu0 0.0
  %569 = vmatpush.msra.mxu0 0.0
  %570 = vmatpush.msra.mxu0 0.0
  %571 = vmatpush.msra.mxu0 0.0
  %572 = vmatpush.msra.mxu0 %v556
  %573 = vmatmul.f32.gmra.mxu0 %v504
  %v574 = vpop.f32.mrf.mxu0
  %v575 = vadd.f32 0.0, %v574
  %576 = vmatmul.f32.gmra.mxu0 %v507
  %v577 = vpop.f32.mrf.mxu0
  %v578 = vadd.f32 0.0, %v577
  %579 = vmatmul.f32.gmra.mxu0 %v510
  %v580 = vpop.f32.mrf.mxu0
  %v581 = vadd.f32 0.0, %v580
  %582 = vmatmul.f32.gmra.mxu0 %v513
  %v583 = vpop.f32.mrf.mxu0
  %v584 = vadd.f32 0.0, %v583
  %585 = vmatmul.f32.gmra.mxu0 %v516
  %v586 = vpop.f32.mrf.mxu0
  %v587 = vadd.f32 0.0, %v586
  %588 = vdwg.mxu0
  %v589 = vld [vmem:[%s165] sm:$0xff]
  %590 = vmatpush.msra.mxu0 0.0
  %591 = vmatpush.msra.mxu0 0.0
  %592 = vmatpush.msra.mxu0 0.0
  %593 = vmatpush.msra.mxu0 0.0
  %594 = vmatpush.msra.mxu0 0.0
  %595 = vmatpush.msra.mxu0 0.0
  %596 = vmatpush.msra.mxu0 0.0
  %597 = vmatpush.msra.mxu0 0.0
  %598 = vmatpush.msra.mxu0 0.0
  %599 = vmatpush.msra.mxu0 0.0
  %600 = vmatpush.msra.mxu0 0.0
  %601 = vmatpush.msra.mxu0 0.0
  %602 = vmatpush.msra.mxu0 0.0
  %603 = vmatpush.msra.mxu0 0.0
  %604 = vmatpush.msra.mxu0 0.0
  %605 = vmatpush.msra.mxu0 %v589
  %606 = vmatmul.f32.gmra.mxu0 %v507
  %v607 = vpop.f32.mrf.mxu0
  %v608 = vadd.f32 0.0, %v607
  %609 = vmatmul.f32.gmra.mxu0 %v510
  %v610 = vpop.f32.mrf.mxu0
  %v611 = vadd.f32 0.0, %v610
  %612 = vmatmul.f32.gmra.mxu0 %v513
  %v613 = vpop.f32.mrf.mxu0
  %v614 = vadd.f32 0.0, %v613
  %615 = vmatmul.f32.gmra.mxu0 %v516
  %v616 = vpop.f32.mrf.mxu0
  %v617 = vadd.f32 0.0, %v616
  %618 = vmatmul.f32.gmra.mxu0 %v519
  %v619 = vpop.f32.mrf.mxu0
  %v620 = vadd.f32 0.0, %v619
  %621 = vdwg.mxu0
  %v622 = vadd.f32 %v539, %v608
  %v623 = vadd.f32 %v554, %v587
  %s624 = scalar_lea.vmem [#allocation2], 192
  %v625 = vld [vmem:[%s624 + $0x8] sm:$0xff]
  %v626 = vadd.f32 %v625, %v622
  %627 = vst.msk [vmem:[%s624 + $0x8] sm:$0xff] %vm78, %v626
  %v628 = vadd.f32 %v542, %v575
  %v629 = vadd.f32 %v545, %v578
  %v630 = vadd.f32 %v548, %v581
  %v631 = vadd.f32 %v551, %v584
  %v632 = vadd.f32 %v628, %v611
  %v633 = vadd.f32 %v629, %v614
  %v634 = vadd.f32 %v630, %v617
  %v635 = vadd.f32 %v631, %v620
  %v636 = vld [vmem:[%s624 + $0x10] sm:$0xff]
  %v637 = vld [vmem:[%s624 + $0x18] sm:$0xff]
  %v638 = vld [vmem:[%s624 + $0x20] sm:$0xff]
  %v639 = vld [vmem:[%s624 + $0x28] sm:$0xff]
  %v640 = vadd.f32 %v636, %v632
  %v641 = vadd.f32 %v637, %v633
  %v642 = vadd.f32 %v638, %v634
  %v643 = vadd.f32 %v639, %v635
  %644 = vst.msk [vmem:[%s624 + $0x10] sm:$0xff] %vm78, %v640
  %645 = vst.msk [vmem:[%s624 + $0x18] sm:$0xff] %vm78, %v641
  %646 = vst.msk [vmem:[%s624 + $0x20] sm:$0xff] %vm78, %v642
  %647 = vst.msk [vmem:[%s624 + $0x28] sm:$0xff] %vm78, %v643
  %v648 = vld [vmem:[%s624 + $0x30] sm:$0xff]
  %v649 = vadd.f32 %v648, %v623
  %650 = vst.msk [vmem:[%s624 + $0x30] sm:$0xff] %vm78, %v649
  %v651 = vld [vmem:[%s227] sm:$0xff]
  %652 = vmatpush.msra.mxu0 0.0
  %653 = vmatpush.msra.mxu0 0.0
  %654 = vmatpush.msra.mxu0 0.0
  %655 = vmatpush.msra.mxu0 0.0
  %656 = vmatpush.msra.mxu0 0.0
  %657 = vmatpush.msra.mxu0 0.0
  %658 = vmatpush.msra.mxu0 0.0
  %659 = vmatpush.msra.mxu0 0.0
  %660 = vmatpush.msra.mxu0 0.0
  %661 = vmatpush.msra.mxu0 0.0
  %662 = vmatpush.msra.mxu0 0.0
  %663 = vmatpush.msra.mxu0 0.0
  %664 = vmatpush.msra.mxu0 0.0
  %665 = vmatpush.msra.mxu0 0.0
  %666 = vmatpush.msra.mxu0 0.0
  %667 = vmatpush.msra.mxu0 %v651
  %668 = vmatmul.f32.gmra.mxu0 %v504
  %v669 = vpop.f32.mrf.mxu0
  %v670 = vadd.f32 0.0, %v669
  %671 = vmatmul.f32.gmra.mxu0 %v507
  %v672 = vpop.f32.mrf.mxu0
  %v673 = vadd.f32 0.0, %v672
  %674 = vmatmul.f32.gmra.mxu0 %v510
  %v675 = vpop.f32.mrf.mxu0
  %v676 = vadd.f32 0.0, %v675
  %677 = vmatmul.f32.gmra.mxu0 %v513
  %v678 = vpop.f32.mrf.mxu0
  %v679 = vadd.f32 0.0, %v678
  %680 = vmatmul.f32.gmra.mxu0 %v516
  %v681 = vpop.f32.mrf.mxu0
  %v682 = vadd.f32 0.0, %v681
  %683 = vmatmul.f32.gmra.mxu0 %v519
  %v684 = vpop.f32.mrf.mxu0
  %v685 = vadd.f32 0.0, %v684
  %686 = vdwg.mxu0
  %v687 = vld [vmem:[%s264] sm:$0xff]
  %688 = vmatpush.msra.mxu0 0.0
  %689 = vmatpush.msra.mxu0 0.0
  %690 = vmatpush.msra.mxu0 0.0
  %691 = vmatpush.msra.mxu0 0.0
  %692 = vmatpush.msra.mxu0 0.0
  %693 = vmatpush.msra.mxu0 0.0
  %694 = vmatpush.msra.mxu0 0.0
  %695 = vmatpush.msra.mxu0 0.0
  %696 = vmatpush.msra.mxu0 0.0
  %697 = vmatpush.msra.mxu0 0.0
  %698 = vmatpush.msra.mxu0 0.0
  %699 = vmatpush.msra.mxu0 0.0
  %700 = vmatpush.msra.mxu0 0.0
  %701 = vmatpush.msra.mxu0 0.0
  %702 = vmatpush.msra.mxu0 0.0
  %703 = vmatpush.msra.mxu0 %v687
  %704 = vmatmul.f32.gmra.mxu0 %v504
  %v705 = vpop.f32.mrf.mxu0
  %v706 = vadd.f32 0.0, %v705
  %707 = vmatmul.f32.gmra.mxu0 %v507
  %v708 = vpop.f32.mrf.mxu0
  %v709 = vadd.f32 0.0, %v708
  %710 = vmatmul.f32.gmra.mxu0 %v510
  %v711 = vpop.f32.mrf.mxu0
  %v712 = vadd.f32 0.0, %v711
  %713 = vmatmul.f32.gmra.mxu0 %v513
  %v714 = vpop.f32.mrf.mxu0
  %v715 = vadd.f32 0.0, %v714
  %716 = vmatmul.f32.gmra.mxu0 %v516
  %v717 = vpop.f32.mrf.mxu0
  %v718 = vadd.f32 0.0, %v717
  %719 = vdwg.mxu0
  %v720 = vld [vmem:[%s298] sm:$0xff]
  %721 = vmatpush.msra.mxu0 0.0
  %722 = vmatpush.msra.mxu0 0.0
  %723 = vmatpush.msra.mxu0 0.0
  %724 = vmatpush.msra.mxu0 0.0
  %725 = vmatpush.msra.mxu0 0.0
  %726 = vmatpush.msra.mxu0 0.0
  %727 = vmatpush.msra.mxu0 0.0
  %728 = vmatpush.msra.mxu0 0.0
  %729 = vmatpush.msra.mxu0 0.0
  %730 = vmatpush.msra.mxu0 0.0
  %731 = vmatpush.msra.mxu0 0.0
  %732 = vmatpush.msra.mxu0 0.0
  %733 = vmatpush.msra.mxu0 0.0
  %734 = vmatpush.msra.mxu0 0.0
  %735 = vmatpush.msra.mxu0 0.0
  %736 = vmatpush.msra.mxu0 %v720
  %737 = vmatmul.f32.gmra.mxu0 %v507
  %v738 = vpop.f32.mrf.mxu0
  %v739 = vadd.f32 0.0, %v738
  %740 = vmatmul.f32.gmra.mxu0 %v510
  %v741 = vpop.f32.mrf.mxu0
  %v742 = vadd.f32 0.0, %v741
  %743 = vmatmul.f32.gmra.mxu0 %v513
  %v744 = vpop.f32.mrf.mxu0
  %v745 = vadd.f32 0.0, %v744
  %746 = vmatmul.f32.gmra.mxu0 %v516
  %v747 = vpop.f32.mrf.mxu0
  %v748 = vadd.f32 0.0, %v747
  %749 = vmatmul.f32.gmra.mxu0 %v519
  %v750 = vpop.f32.mrf.mxu0
  %v751 = vadd.f32 0.0, %v750
  %752 = vdwg.mxu0
  %v753 = vadd.f32 %v670, %v739
  %v754 = vadd.f32 %v685, %v718
  %s755 = scalar_lea.vmem [#allocation2], 256
  %v756 = vld [vmem:[%s755 + $0x8] sm:$0xff]
  %v757 = vadd.f32 %v756, %v753
  %758 = vst.msk [vmem:[%s755 + $0x8] sm:$0xff] %vm78, %v757
  %v759 = vadd.f32 %v673, %v706
  %v760 = vadd.f32 %v676, %v709
  %v761 = vadd.f32 %v679, %v712
  %v762 = vadd.f32 %v682, %v715
  %v763 = vadd.f32 %v759, %v742
  %v764 = vadd.f32 %v760, %v745
  %v765 = vadd.f32 %v761, %v748
  %v766 = vadd.f32 %v762, %v751
  %v767 = vld [vmem:[%s755 + $0x10] sm:$0xff]
  %v768 = vld [vmem:[%s755 + $0x18] sm:$0xff]
  %v769 = vld [vmem:[%s755 + $0x20] sm:$0xff]
  %v770 = vld [vmem:[%s755 + $0x28] sm:$0xff]
  %v771 = vadd.f32 %v767, %v763
  %v772 = vadd.f32 %v768, %v764
  %v773 = vadd.f32 %v769, %v765
  %v774 = vadd.f32 %v770, %v766
  %775 = vst.msk [vmem:[%s755 + $0x10] sm:$0xff] %vm78, %v771
  %776 = vst.msk [vmem:[%s755 + $0x18] sm:$0xff] %vm78, %v772
  %777 = vst.msk [vmem:[%s755 + $0x20] sm:$0xff] %vm78, %v773
  %778 = vst.msk [vmem:[%s755 + $0x28] sm:$0xff] %vm78, %v774
  %v779 = vld [vmem:[%s755 + $0x30] sm:$0xff]
  %v780 = vadd.f32 %v779, %v754
  %781 = vst.msk [vmem:[%s755 + $0x30] sm:$0xff] %vm78, %v780
  %v782 = vld [vmem:[%s361] sm:$0xff]
  %783 = vmatpush.msra.mxu0 0.0
  %784 = vmatpush.msra.mxu0 0.0
  %785 = vmatpush.msra.mxu0 0.0
  %786 = vmatpush.msra.mxu0 0.0
  %787 = vmatpush.msra.mxu0 0.0
  %788 = vmatpush.msra.mxu0 0.0
  %789 = vmatpush.msra.mxu0 0.0
  %790 = vmatpush.msra.mxu0 0.0
  %791 = vmatpush.msra.mxu0 0.0
  %792 = vmatpush.msra.mxu0 0.0
  %793 = vmatpush.msra.mxu0 0.0
  %794 = vmatpush.msra.mxu0 0.0
  %795 = vmatpush.msra.mxu0 0.0
  %796 = vmatpush.msra.mxu0 0.0
  %797 = vmatpush.msra.mxu0 0.0
  %798 = vmatpush.msra.mxu0 %v782
  %799 = vmatmul.f32.gmra.mxu0 %v504
  %v800 = vpop.f32.mrf.mxu0
  %v801 = vadd.f32 0.0, %v800
  %802 = vmatmul.f32.gmra.mxu0 %v507
  %v803 = vpop.f32.mrf.mxu0
  %v804 = vadd.f32 0.0, %v803
  %805 = vmatmul.f32.gmra.mxu0 %v510
  %v806 = vpop.f32.mrf.mxu0
  %v807 = vadd.f32 0.0, %v806
  %808 = vmatmul.f32.gmra.mxu0 %v513
  %v809 = vpop.f32.mrf.mxu0
  %v810 = vadd.f32 0.0, %v809
  %811 = vmatmul.f32.gmra.mxu0 %v516
  %v812 = vpop.f32.mrf.mxu0
  %v813 = vadd.f32 0.0, %v812
  %814 = vmatmul.f32.gmra.mxu0 %v519
  %v815 = vpop.f32.mrf.mxu0
  %v816 = vadd.f32 0.0, %v815
  %817 = vdwg.mxu0
  %v818 = vld [vmem:[%s398] sm:$0xff]
  %819 = vmatpush.msra.mxu0 0.0
  %820 = vmatpush.msra.mxu0 0.0
  %821 = vmatpush.msra.mxu0 0.0
  %822 = vmatpush.msra.mxu0 0.0
  %823 = vmatpush.msra.mxu0 0.0
  %824 = vmatpush.msra.mxu0 0.0
  %825 = vmatpush.msra.mxu0 0.0
  %826 = vmatpush.msra.mxu0 0.0
  %827 = vmatpush.msra.mxu0 0.0
  %828 = vmatpush.msra.mxu0 0.0
  %829 = vmatpush.msra.mxu0 0.0
  %830 = vmatpush.msra.mxu0 0.0
  %831 = vmatpush.msra.mxu0 0.0
  %832 = vmatpush.msra.mxu0 0.0
  %833 = vmatpush.msra.mxu0 0.0
  %834 = vmatpush.msra.mxu0 %v818
  %835 = vmatmul.f32.gmra.mxu0 %v504
  %v836 = vpop.f32.mrf.mxu0
  %v837 = vadd.f32 0.0, %v836
  %838 = vmatmul.f32.gmra.mxu0 %v507
  %v839 = vpop.f32.mrf.mxu0
  %v840 = vadd.f32 0.0, %v839
  %841 = vmatmul.f32.gmra.mxu0 %v510
  %v842 = vpop.f32.mrf.mxu0
  %v843 = vadd.f32 0.0, %v842
  %844 = vmatmul.f32.gmra.mxu0 %v513
  %v845 = vpop.f32.mrf.mxu0
  %v846 = vadd.f32 0.0, %v845
  %847 = vmatmul.f32.gmra.mxu0 %v516
  %v848 = vpop.f32.mrf.mxu0
  %v849 = vadd.f32 0.0, %v848
  %850 = vdwg.mxu0
  %v851 = vld [vmem:[%s432] sm:$0xff]
  %852 = vmatpush.msra.mxu0 0.0
  %853 = vmatpush.msra.mxu0 0.0
  %854 = vmatpush.msra.mxu0 0.0
  %855 = vmatpush.msra.mxu0 0.0
  %856 = vmatpush.msra.mxu0 0.0
  %857 = vmatpush.msra.mxu0 0.0
  %858 = vmatpush.msra.mxu0 0.0
  %859 = vmatpush.msra.mxu0 0.0
  %860 = vmatpush.msra.mxu0 0.0
  %861 = vmatpush.msra.mxu0 0.0
  %862 = vmatpush.msra.mxu0 0.0
  %863 = vmatpush.msra.mxu0 0.0
  %864 = vmatpush.msra.mxu0 0.0
  %865 = vmatpush.msra.mxu0 0.0
  %866 = vmatpush.msra.mxu0 0.0
  %867 = vmatpush.msra.mxu0 %v851
  %868 = vmatmul.f32.gmra.mxu0 %v507
  %v869 = vpop.f32.mrf.mxu0
  %v870 = vadd.f32 0.0, %v869
  %871 = vmatmul.f32.gmra.mxu0 %v510
  %v872 = vpop.f32.mrf.mxu0
  %v873 = vadd.f32 0.0, %v872
  %874 = vmatmul.f32.gmra.mxu0 %v513
  %v875 = vpop.f32.mrf.mxu0
  %v876 = vadd.f32 0.0, %v875
  %877 = vmatmul.f32.gmra.mxu0 %v516
  %v878 = vpop.f32.mrf.mxu0
  %v879 = vadd.f32 0.0, %v878
  %880 = vmatmul.f32.gmra.mxu0 %v519
  %v881 = vpop.f32.mrf.mxu0
  %v882 = vadd.f32 0.0, %v881
  %883 = vdwg.mxu0
  %v884 = vadd.f32 %v801, %v870
  %v885 = vadd.f32 %v816, %v849
  %s886 = scalar_lea.vmem [#allocation2], 320
  %v887 = vld [vmem:[%s886 + $0x8] sm:$0xff]
  %v888 = vadd.f32 %v887, %v884
  %889 = vst.msk [vmem:[%s886 + $0x8] sm:$0xff] %vm78, %v888
  %v890 = vadd.f32 %v804, %v837
  %v891 = vadd.f32 %v807, %v840
  %v892 = vadd.f32 %v810, %v843
  %v893 = vadd.f32 %v813, %v846
  %v894 = vadd.f32 %v890, %v873
  %v895 = vadd.f32 %v891, %v876
  %v896 = vadd.f32 %v892, %v879
  %v897 = vadd.f32 %v893, %v882
  %v898 = vld [vmem:[%s886 + $0x10] sm:$0xff]
  %v899 = vld [vmem:[%s886 + $0x18] sm:$0xff]
  %v900 = vld [vmem:[%s886 + $0x20] sm:$0xff]
  %v901 = vld [vmem:[%s886 + $0x28] sm:$0xff]
  %v902 = vadd.f32 %v898, %v894
  %v903 = vadd.f32 %v899, %v895
  %v904 = vadd.f32 %v900, %v896
  %v905 = vadd.f32 %v901, %v897
  %906 = vst.msk [vmem:[%s886 + $0x10] sm:$0xff] %vm78, %v902
  %907 = vst.msk [vmem:[%s886 + $0x18] sm:$0xff] %vm78, %v903
  %908 = vst.msk [vmem:[%s886 + $0x20] sm:$0xff] %vm78, %v904
  %909 = vst.msk [vmem:[%s886 + $0x28] sm:$0xff] %vm78, %v905
  %v910 = vld [vmem:[%s886 + $0x30] sm:$0xff]
  %v911 = vadd.f32 %v910, %v885
  %912 = vst.msk [vmem:[%s886 + $0x30] sm:$0xff] %vm78, %v911
  // Predicated region
  $region22: #{tpu_custom_call.1} parent=0 // pred_check
    %p913 = pneg %p17
  $region23: #{tpu_custom_call.1} parent=0 // pred_check_branch
    %915 = sbr.rel (%p913) target = $region25
  $region24: #{tpu_custom_call.1} parent=0 // pred_region
    %v916 = vld [vmem:[%s2] sm:$0x1]
    %v917 = vld [vmem:[%s3] sm:$0x1]
    %v918 = vld [vmem:[%s334 + $0x8] sm:$0xff]
    %v919 = vld [vmem:[%s334 + $0x10] sm:$0xff]
    %v920 = vld [vmem:[%s334 + $0x18] sm:$0xff]
    %v921 = vld [vmem:[%s334 + $0x20] sm:$0xff]
    %v922 = vld [vmem:[%s334 + $0x28] sm:$0xff]
    %v923 = vld [vmem:[%s334 + $0x30] sm:$0xff]
    %v924 = vld [vmem:[#allocation2 + $0x7] sm:$0xff]
    %v925 = vld [vmem:[#allocation2 + $0xf] sm:$0xff]
    %v926 = vld [vmem:[#allocation2 + $0x17] sm:$0xff]
    %v927 = vld [vmem:[#allocation2 + $0x1f] sm:$0xff]
    %v928 = vld [vmem:[#allocation2 + $0x27] sm:$0xff]
    %v929 = vld [vmem:[#allocation2 + $0x2f] sm:$0xff]
    %v930 = vld [vmem:[%s468 + $0x9] sm:$0xff]
    %v931 = vld [vmem:[%s468 + $0x11] sm:$0xff]
    %v932 = vld [vmem:[%s468 + $0x19] sm:$0xff]
    %v933 = vld [vmem:[%s468 + $0x21] sm:$0xff]
    %v934 = vld [vmem:[%s468 + $0x29] sm:$0xff]
    %v935 = vld [vmem:[%s468 + $0x31] sm:$0xff]
    %v936 = vadd.f32 %v918, %v924
    %v937 = vadd.f32 %v919, %v925
    %v938 = vadd.f32 %v920, %v926
    %v939 = vadd.f32 %v921, %v927
    %v940 = vadd.f32 %v922, %v928
    %v941 = vadd.f32 %v923, %v929
    %v942 = vadd.f32 %v936, %v930
    %v943 = vadd.f32 %v937, %v931
    %v944 = vadd.f32 %v938, %v932
    %v945 = vadd.f32 %v939, %v933
    %v946 = vadd.f32 %v940, %v934
    %v947 = vadd.f32 %v941, %v935
    %v949 = vperm.slane %v916, 0
    %v951 = vmul.f32 %v942, %v949
    %v952 = vmul.f32 %v943, %v949
    %v953 = vmul.f32 %v944, %v949
    %v954 = vmul.f32 %v945, %v949
    %v955 = vmul.f32 %v946, %v949
    %v956 = vmul.f32 %v947, %v949
    %v958 = vperm.slane %v917, 0
    %v960 = vadd.f32 %v951, %v958
    %v961 = vadd.f32 %v952, %v958
    %v962 = vadd.f32 %v953, %v958
    %v963 = vadd.f32 %v954, %v958
    %v964 = vadd.f32 %v955, %v958
    %v965 = vadd.f32 %v956, %v958
    %966 = vst.msk [vmem:[%s4] sm:$0xff] %vm78, %v960
    %967 = vst.msk [vmem:[%s4 + $0x8] sm:$0xff] %vm78, %v961
    %968 = vst.msk [vmem:[%s4 + $0x10] sm:$0xff] %vm78, %v962
    %969 = vst.msk [vmem:[%s4 + $0x18] sm:$0xff] %vm78, %v963
    %970 = vst.msk [vmem:[%s4 + $0x20] sm:$0xff] %vm78, %v964
    %971 = vst.msk [vmem:[%s4 + $0x28] sm:$0xff] %vm78, %v965
    %v972 = vld [vmem:[%s755 + $0x8] sm:$0xff]
    %v973 = vld [vmem:[%s755 + $0x10] sm:$0xff]
    %v974 = vld [vmem:[%s755 + $0x18] sm:$0xff]
    %v975 = vld [vmem:[%s755 + $0x20] sm:$0xff]
    %v976 = vld [vmem:[%s755 + $0x28] sm:$0xff]
    %v977 = vld [vmem:[%s755 + $0x30] sm:$0xff]
    %v978 = vld [vmem:[%s624 + $0x7] sm:$0xff]
    %v979 = vld [vmem:[%s624 + $0xf] sm:$0xff]
    %v980 = vld [vmem:[%s624 + $0x17] sm:$0xff]
    %v981 = vld [vmem:[%s624 + $0x1f] sm:$0xff]
    %v982 = vld [vmem:[%s624 + $0x27] sm:$0xff]
    %v983 = vld [vmem:[%s624 + $0x2f] sm:$0xff]
    %v984 = vld [vmem:[%s886 + $0x9] sm:$0xff]
    %v985 = vld [vmem:[%s886 + $0x11] sm:$0xff]
    %v986 = vld [vmem:[%s886 + $0x19] sm:$0xff]
    %v987 = vld [vmem:[%s886 + $0x21] sm:$0xff]
    %v988 = vld [vmem:[%s886 + $0x29] sm:$0xff]
    %v989 = vld [vmem:[%s886 + $0x31] sm:$0xff]
    %v990 = vadd.f32 %v972, %v978
    %v991 = vadd.f32 %v973, %v979
    %v992 = vadd.f32 %v974, %v980
    %v993 = vadd.f32 %v975, %v981
    %v994 = vadd.f32 %v976, %v982
    %v995 = vadd.f32 %v977, %v983
    %v996 = vadd.f32 %v990, %v984
    %v997 = vadd.f32 %v991, %v985
    %v998 = vadd.f32 %v992, %v986
    %v999 = vadd.f32 %v993, %v987
    %v1000 = vadd.f32 %v994, %v988
    %v1001 = vadd.f32 %v995, %v989
    %v1002 = vmul.f32 %v996, %v949
    %v1003 = vmul.f32 %v997, %v949
    %v1004 = vmul.f32 %v998, %v949
    %v1005 = vmul.f32 %v999, %v949
    %v1006 = vmul.f32 %v1000, %v949
    %v1007 = vmul.f32 %v1001, %v949
    %v1008 = vadd.f32 %v1002, %v958
    %v1009 = vadd.f32 %v1003, %v958
    %v1010 = vadd.f32 %v1004, %v958
    %v1011 = vadd.f32 %v1005, %v958
    %v1012 = vadd.f32 %v1006, %v958
    %v1013 = vadd.f32 %v1007, %v958
    %s1014 = scalar_lea.vmem %s4, 48
    %1015 = vst.msk [vmem:[%s1014] sm:$0xff] %vm78, %v1008
    %1016 = vst.msk [vmem:[%s1014 + $0x8] sm:$0xff] %vm78, %v1009
    %1017 = vst.msk [vmem:[%s1014 + $0x10] sm:$0xff] %vm78, %v1010
    %1018 = vst.msk [vmem:[%s1014 + $0x18] sm:$0xff] %vm78, %v1011
    %1019 = vst.msk [vmem:[%s1014 + $0x20] sm:$0xff] %vm78, %v1012
    %1020 = vst.msk [vmem:[%s1014 + $0x28] sm:$0xff] %vm78, %v1013
  $region25: #{tpu_custom_call.1} parent=0 // pred_fallthru
    _
  // Predicated region
  $region26: #{tpu_custom_call.1} parent=0 // pred_check
    _
  $region27: #{tpu_custom_call.1} parent=0 // pred_check_branch
    %1022 = sbr.rel (0) target = $region29
  $region28: #{tpu_custom_call.1} parent=0 // pred_region
    _
  $region29: #{tpu_custom_call.1} parent=0 // pred_fallthru
    _
  // Predicated region
  $region30: #{tpu_custom_call.1} parent=0 // pred_check
    _
  $region31: #{tpu_custom_call.1} parent=0 // pred_check_branch
    %1024 = sbr.rel (0) target = $region33
  $region32: #{tpu_custom_call.1} parent=0 // pred_region
    _
  $region33: #{tpu_custom_call.1} parent=0 // pred_fallthru
    _

</llo_original>
